<compile_context>
chip_gen: v6e
topology: v6e:2x2x1
jax: 0.10.0
libtpu: 0.0.40
codegen_flags: <defaults>
</compile_context>

<pallas_src>
import functools

import jax
import jax.numpy as jnp
from jax.experimental import pallas as pl
from jax.experimental.pallas import tpu as pltpu


def _round_up(x: int, m: int) -> int:
    return ((x + m - 1) // m) * m


# ----------------------------------------------------------------------------
# Gather fast path: B << n_items (the common MAB serving/training case).
# ----------------------------------------------------------------------------
def mab_gather_kernel(ids_ref, emb_hbm, w_ref, b_ref, o_ref, rows_buf, sems):
    """Grid point t = one batch tile of TB ids.

    ids_ref:  (B_pad,) int32 SMEM (scalar-prefetched; padded with 0 = valid row)
    emb_hbm:  (n_items, H) table, native dtype, left in HBM (pl.ANY)
    w_ref:    (1, H)  f32 VMEM   -- fc weight row
    b_ref:    (1, 1)  f32 SMEM   -- fc bias (scalar)
    o_ref:    (TB, 1) f32 VMEM   -- scores for this batch tile
    rows_buf: (TB, H) VMEM scratch, table dtype
    sems:     (TB,)   DMA semaphores
    """
    t = pl.program_id(0)
    tb, _ = rows_buf.shape
    base = t * tb

    # Issue one row-gather DMA per id in this tile (HBM -> VMEM), then wait.
    for r in range(tb):
        row = ids_ref[base + r]
        pltpu.make_async_copy(
            emb_hbm.at[pl.ds(row, 1)], rows_buf.at[pl.ds(r, 1)], sems.at[r]
        ).start()
    for r in range(tb):
        pltpu.make_async_copy(
            emb_hbm.at[pl.ds(0, 1)], rows_buf.at[pl.ds(r, 1)], sems.at[r]
        ).wait()

    # score[r] = emb[ids[r], :] . w + bias  (VPU multiply + lane reduction).
    rows = rows_buf[...].astype(jnp.float32)                       # (TB, H)
    o_ref[...] = (
        jnp.sum(rows * w_ref[...], axis=-1, keepdims=True) + b_ref[0, 0]
    )


@functools.partial(jax.jit, static_argnames=("block_b",))
def mab_forward_gather(item_ids, emb_table, fc_w, fc_b, *, block_b=16):
    """item_ids: (B,); emb_table: (n_items, H); fc_w: (1, H); fc_b: (1,)."""
    B = item_ids.shape[0]
    n_items, H = emb_table.shape

    tb = max(8, _round_up(min(block_b, _round_up(B, 8)), 8))
    b_pad = _round_up(B, tb)

    # Pad ids with 0 (must be a VALID row: we DMA from it); padded rows of the
    # output are dropped in the wrapper, so their (well-defined) value is moot.
    ids = jnp.zeros((b_pad,), jnp.int32).at[:B].set(item_ids.astype(jnp.int32))
    w = fc_w.reshape(1, H).astype(jnp.float32)
    b = fc_b.reshape(1, 1).astype(jnp.float32)

    out = pl.pallas_call(
        mab_gather_kernel,
        out_shape=jax.ShapeDtypeStruct((b_pad, 1), jnp.float32),
        grid_spec=pltpu.PrefetchScalarGridSpec(
            num_scalar_prefetch=1,              # ids -> SMEM
            grid=(b_pad // tb,),
            in_specs=[
                pl.BlockSpec(memory_space=pl.ANY),                   # table (HBM)
                pl.BlockSpec((1, H), lambda t, ids: (0, 0)),         # fc weight
                pl.BlockSpec(memory_space=pltpu.MemorySpace.SMEM),   # fc bias
            ],
            out_specs=pl.BlockSpec((tb, 1), lambda t, ids: (t, 0)),
            scratch_shapes=[
                pltpu.VMEM((tb, H), emb_table.dtype),
                pltpu.SemaphoreType.DMA((tb,)),
            ],
        ),
        compiler_params=pltpu.CompilerParams(
            dimension_semantics=("parallel",),   # batch tiles shard across TCs
            vmem_limit_bytes=32 * 1024 * 1024,
        ),
    )(ids, emb_table, w, b)

    return out[:B]


# ----------------------------------------------------------------------------
# Stream fallback path: B >= n_items -> read the table exactly once.
# ----------------------------------------------------------------------------
def mab_stream_kernel(ids_ref, emb_ref, w_ref, b_ref, o_ref):
    """Grid point kt = one chunk of the embedding table (only grid axis).

    ids_ref: (1, B_pad) int32 VMEM -- all item ids, resident (-1 = padding)
    emb_ref: (TK, H)    VMEM       -- rows [kt*TK, kt*TK+TK) of the table
                                      (native dtype; tail rows may be garbage)
    w_ref:   (1, H)  f32 VMEM      -- fc weight row
    b_ref:   (1, 1)  f32 SMEM      -- fc bias
    o_ref:   (1, B_pad) f32 VMEM   -- lane-dense output, resident across kt
    """
    kt = pl.program_id(0)
    tk = emb_ref.shape[0]
    b_pad = ids_ref.shape[1]

    @pl.when(kt == 0)
    def _():
        o_ref[...] = jnp.zeros_like(o_ref) + b_ref[0, 0]

    # Per-row partial scores for this chunk (upcast in-kernel; table stays
    # native-dtype and unpadded in HBM).
    emb = emb_ref[...].astype(jnp.float32)                          # (TK, H)
    scores = jnp.sum(emb * w_ref[...], axis=-1, keepdims=True)      # (TK, 1)

    # One-hot select: any garbage tail row has row_id >= n_items and can never
    # match a valid id, and where()'s false branch is a literal 0.0.
    ids = ids_ref[...]                                              # (1, B_pad)
    row_ids = kt * tk + jax.lax.broadcasted_iota(jnp.int32, (tk, b_pad), 0)
    hit = row_ids == ids                                            # (TK, B_pad)
    o_ref[...] += jnp.sum(jnp.where(hit, scores, 0.0), axis=0, keepdims=True)


@functools.partial(jax.jit, static_argnames=("block_k",))
def mab_forward_stream(item_ids, emb_table, fc_w, fc_b, *, block_k=512):
    B = item_ids.shape[0]
    n_items, H = emb_table.shape

    b_pad = _round_up(max(B, 128), 128)          # lane-dense batch row
    tk = min(block_k, _round_up(n_items, 8))
    # Keep the (TK, B_pad) select intermediates + double-buffered table tile
    # well inside the 32 MiB scoped-VMEM budget (v7x only has 64 MiB total).
    row_cap = max(8, (4 * 1024 * 1024) // (4 * b_pad))
    tk = max(8, min(tk, (row_cap // 8) * 8))

    ids = jnp.full((1, b_pad), -1, dtype=jnp.int32)   # -1 never matches a row
    ids = ids.at[0, :B].set(item_ids.astype(jnp.int32))
    w = fc_w.reshape(1, H).astype(jnp.float32)
    b = fc_b.reshape(1, 1).astype(jnp.float32)

    # TODO(synk): v7x — shard the table axis across the 2 TensorCores (leading
    # size-2 parallel axis with per-core partial sums + a wrapper-side add).
    out = pl.pallas_call(
        mab_stream_kernel,
        out_shape=jax.ShapeDtypeStruct((1, b_pad), jnp.float32),
        grid_spec=pltpu.PrefetchScalarGridSpec(
            num_scalar_prefetch=0,
            grid=(pl.cdiv(n_items, tk),),         # table read exactly once
            in_specs=[
                pl.BlockSpec((1, b_pad), lambda kt: (0, 0)),         # ids
                pl.BlockSpec((tk, H), lambda kt: (kt, 0)),           # table chunk
                pl.BlockSpec((1, H), lambda kt: (0, 0)),             # fc weight
                pl.BlockSpec(memory_space=pltpu.MemorySpace.SMEM),   # fc bias
            ],
            out_specs=pl.BlockSpec((1, b_pad), lambda kt: (0, 0)),
        ),
        compiler_params=pltpu.CompilerParams(
            dimension_semantics=("arbitrary",),
            vmem_limit_bytes=32 * 1024 * 1024,
        ),
    )(ids, emb_table, w, b)

    return out[0, :B].reshape(B, 1)


def mab_forward(item_ids, emb_table, fc_w, fc_b, *, block_b=16, block_k=512):
    """PyTorch-equivalent forward: fc(item_embedding(item_ids)) -> (B, 1)."""
    B = item_ids.shape[0]
    n_items = emb_table.shape[0]
    if B < n_items:   # gather only the needed rows (B*H bytes of table traffic)
        return mab_forward_gather(item_ids, emb_table, fc_w, fc_b, block_b=block_b)
    return mab_forward_stream(item_ids, emb_table, fc_w, fc_b, block_k=block_k)


if __name__ == "__main__":
    key = jax.random.PRNGKey(0)
    n_items, hidden = 200, 64
    k1, k2, k3, k4, k5 = jax.random.split(key, 5)

    # Deterministic parameter init mirroring PyTorch defaults:
    #   nn.Embedding -> N(0, 1); nn.Linear -> U(-1/sqrt(H), 1/sqrt(H)).
    emb_table = jax.random.normal(k1, (n_items, hidden), dtype=jnp.float32)
    bound = 1.0 / float(hidden ** 0.5)
    fc_w = jax.random.uniform(k2, (1, hidden), jnp.float32, -bound, bound)
    fc_b = jax.random.uniform(k3, (1,), jnp.float32, -bound, bound)

    def ref(ids):
        return emb_table[ids] @ fc_w.T + fc_b                     # (B, 1)

    # Gather fast path (B << n_items) — default dispatch.
    ids_small = jax.random.randint(k4, (16,), 0, n_items, dtype=jnp.int32)
    out_g = jax.block_until_ready(mab_forward(ids_small, emb_table, fc_w, fc_b))
    assert out_g.shape == (16, 1), out_g.shape
    assert jnp.allclose(out_g, ref(ids_small), atol=1e-5, rtol=1e-5)

    # Stream fallback (B >= n_items): table read once, multi-chunk accumulation
    # with a ragged unpadded tail chunk (block_k=64 forces 4 grid steps).
    ids_big = jax.random.randint(k5, (256,), 0, n_items, dtype=jnp.int32)
    out_s = jax.block_until_ready(
        mab_forward_stream(ids_big, emb_table, fc_w, fc_b, block_k=64))
    assert out_s.shape == (256, 1), out_s.shape
    assert jnp.allclose(out_s, ref(ids_big), atol=1e-5, rtol=1e-5)

    print("KERNEL_OK")
</pallas_src>

<mosaic_0001>
module attributes {stable_mosaic.version = 11 : i64} {
  func.func @mab_gather_kernel(%arg0: i32, %arg1: memref<16xi32, #tpu.memory_space<smem>>, %arg2: memref<200x64xf32, #tpu.memory_space<any>>, %arg3: memref<1x64xf32, #tpu.memory_space<vmem>>, %arg4: memref<1x1xf32, #tpu.memory_space<smem>>, %arg5: memref<16x1xf32, #tpu.memory_space<vmem>>, %arg6: memref<16x64xf32, #tpu.memory_space<vmem>>, %arg7: memref<16x!tpu.dma_semaphore, #tpu.memory_space<semaphore_mem>>) attributes {dimension_semantics = [#tpu.dimension_semantics<parallel>], iteration_bounds = array<i64: 1>, scalar_prefetch = 1 : i64, scratch_operands = 2 : i64, tpu.core_type = #tpu.core_type<tc>, window_params = [{}, {pipeline_mode = #tpu.pipeline_mode<synchronous>, transform_indices = @transform_1, window_bounds = array<i64: 1, 64>}, {transform_indices = @transform_2, window_bounds = array<i64: 1, 1>}, {transform_indices = @transform_3, window_bounds = array<i64: 16, 1>}]} {
    %c16_i32 = arith.constant 16 : i32
    %0 = arith.muli %arg0, %c16_i32 : i32
    %c0_i32 = arith.constant 0 : i32
    %1 = arith.addi %0, %c0_i32 : i32
    %2 = arith.index_cast %1 : i32 to index
    %3 = memref.load %arg1[%2] : memref<16xi32, #tpu.memory_space<smem>>
    %c0_i32_0 = arith.constant 0 : i32
    %c0_i32_1 = arith.constant 0 : i32
    %4 = tpu.memref_slice %arg2[%3, %c0_i32_1] : memref<200x64xf32, #tpu.memory_space<any>> -> memref<1x64xf32, #tpu.memory_space<any>>
    %c0_i32_2 = arith.constant 0 : i32
    %c0_i32_3 = arith.constant 0 : i32
    %5 = tpu.memref_slice %arg6[%c0_i32_2, %c0_i32_3] : memref<16x64xf32, #tpu.memory_space<vmem>> -> memref<1x64xf32, #tpu.memory_space<vmem>>
    %6 = tpu.memref_slice %arg7[%c0_i32_0] : memref<16x!tpu.dma_semaphore, #tpu.memory_space<semaphore_mem>> -> memref<1x!tpu.dma_semaphore, #tpu.memory_space<semaphore_mem>>
    %7 = tpu.memref_squeeze %6 : memref<1x!tpu.dma_semaphore, #tpu.memory_space<semaphore_mem>> -> memref<!tpu.dma_semaphore, #tpu.memory_space<semaphore_mem>>
    tpu.enqueue_dma source(%4 : memref<1x64xf32, #tpu.memory_space<any>>) target(%5 : memref<1x64xf32, #tpu.memory_space<vmem>>) target_semaphore(%7 : memref<!tpu.dma_semaphore, #tpu.memory_space<semaphore_mem>>)
    %c1_i32 = arith.constant 1 : i32
    %8 = arith.addi %0, %c1_i32 : i32
    %9 = arith.index_cast %8 : i32 to index
    %10 = memref.load %arg1[%9] : memref<16xi32, #tpu.memory_space<smem>>
    %c1_i32_4 = arith.constant 1 : i32
    %c0_i32_5 = arith.constant 0 : i32
    %11 = tpu.memref_slice %arg2[%10, %c0_i32_5] : memref<200x64xf32, #tpu.memory_space<any>> -> memref<1x64xf32, #tpu.memory_space<any>>
    %c1_i32_6 = arith.constant 1 : i32
    %c0_i32_7 = arith.constant 0 : i32
    %12 = tpu.memref_slice %arg6[%c1_i32_6, %c0_i32_7] : memref<16x64xf32, #tpu.memory_space<vmem>> -> memref<1x64xf32, #tpu.memory_space<vmem>>
    %13 = tpu.memref_slice %arg7[%c1_i32_4] : memref<16x!tpu.dma_semaphore, #tpu.memory_space<semaphore_mem>> -> memref<1x!tpu.dma_semaphore, #tpu.memory_space<semaphore_mem>>
    %14 = tpu.memref_squeeze %13 : memref<1x!tpu.dma_semaphore, #tpu.memory_space<semaphore_mem>> -> memref<!tpu.dma_semaphore, #tpu.memory_space<semaphore_mem>>
    tpu.enqueue_dma source(%11 : memref<1x64xf32, #tpu.memory_space<any>>) target(%12 : memref<1x64xf32, #tpu.memory_space<vmem>>) target_semaphore(%14 : memref<!tpu.dma_semaphore, #tpu.memory_space<semaphore_mem>>)
    %c2_i32 = arith.constant 2 : i32
    %15 = arith.addi %0, %c2_i32 : i32
    %16 = arith.index_cast %15 : i32 to index
    %17 = memref.load %arg1[%16] : memref<16xi32, #tpu.memory_space<smem>>
    %c2_i32_8 = arith.constant 2 : i32
    %c0_i32_9 = arith.constant 0 : i32
    %18 = tpu.memref_slice %arg2[%17, %c0_i32_9] : memref<200x64xf32, #tpu.memory_space<any>> -> memref<1x64xf32, #tpu.memory_space<any>>
    %c2_i32_10 = arith.constant 2 : i32
    %c0_i32_11 = arith.constant 0 : i32
    %19 = tpu.memref_slice %arg6[%c2_i32_10, %c0_i32_11] : memref<16x64xf32, #tpu.memory_space<vmem>> -> memref<1x64xf32, #tpu.memory_space<vmem>>
    %20 = tpu.memref_slice %arg7[%c2_i32_8] : memref<16x!tpu.dma_semaphore, #tpu.memory_space<semaphore_mem>> -> memref<1x!tpu.dma_semaphore, #tpu.memory_space<semaphore_mem>>
    %21 = tpu.memref_squeeze %20 : memref<1x!tpu.dma_semaphore, #tpu.memory_space<semaphore_mem>> -> memref<!tpu.dma_semaphore, #tpu.memory_space<semaphore_mem>>
    tpu.enqueue_dma source(%18 : memref<1x64xf32, #tpu.memory_space<any>>) target(%19 : memref<1x64xf32, #tpu.memory_space<vmem>>) target_semaphore(%21 : memref<!tpu.dma_semaphore, #tpu.memory_space<semaphore_mem>>)
    %c3_i32 = arith.constant 3 : i32
    %22 = arith.addi %0, %c3_i32 : i32
    %23 = arith.index_cast %22 : i32 to index
    %24 = memref.load %arg1[%23] : memref<16xi32, #tpu.memory_space<smem>>
    %c3_i32_12 = arith.constant 3 : i32
    %c0_i32_13 = arith.constant 0 : i32
    %25 = tpu.memref_slice %arg2[%24, %c0_i32_13] : memref<200x64xf32, #tpu.memory_space<any>> -> memref<1x64xf32, #tpu.memory_space<any>>
    %c3_i32_14 = arith.constant 3 : i32
    %c0_i32_15 = arith.constant 0 : i32
    %26 = tpu.memref_slice %arg6[%c3_i32_14, %c0_i32_15] : memref<16x64xf32, #tpu.memory_space<vmem>> -> memref<1x64xf32, #tpu.memory_space<vmem>>
    %27 = tpu.memref_slice %arg7[%c3_i32_12] : memref<16x!tpu.dma_semaphore, #tpu.memory_space<semaphore_mem>> -> memref<1x!tpu.dma_semaphore, #tpu.memory_space<semaphore_mem>>
    %28 = tpu.memref_squeeze %27 : memref<1x!tpu.dma_semaphore, #tpu.memory_space<semaphore_mem>> -> memref<!tpu.dma_semaphore, #tpu.memory_space<semaphore_mem>>
    tpu.enqueue_dma source(%25 : memref<1x64xf32, #tpu.memory_space<any>>) target(%26 : memref<1x64xf32, #tpu.memory_space<vmem>>) target_semaphore(%28 : memref<!tpu.dma_semaphore, #tpu.memory_space<semaphore_mem>>)
    %c4_i32 = arith.constant 4 : i32
    %29 = arith.addi %0, %c4_i32 : i32
    %30 = arith.index_cast %29 : i32 to index
    %31 = memref.load %arg1[%30] : memref<16xi32, #tpu.memory_space<smem>>
    %c4_i32_16 = arith.constant 4 : i32
    %c0_i32_17 = arith.constant 0 : i32
    %32 = tpu.memref_slice %arg2[%31, %c0_i32_17] : memref<200x64xf32, #tpu.memory_space<any>> -> memref<1x64xf32, #tpu.memory_space<any>>
    %c4_i32_18 = arith.constant 4 : i32
    %c0_i32_19 = arith.constant 0 : i32
    %33 = tpu.memref_slice %arg6[%c4_i32_18, %c0_i32_19] : memref<16x64xf32, #tpu.memory_space<vmem>> -> memref<1x64xf32, #tpu.memory_space<vmem>>
    %34 = tpu.memref_slice %arg7[%c4_i32_16] : memref<16x!tpu.dma_semaphore, #tpu.memory_space<semaphore_mem>> -> memref<1x!tpu.dma_semaphore, #tpu.memory_space<semaphore_mem>>
    %35 = tpu.memref_squeeze %34 : memref<1x!tpu.dma_semaphore, #tpu.memory_space<semaphore_mem>> -> memref<!tpu.dma_semaphore, #tpu.memory_space<semaphore_mem>>
    tpu.enqueue_dma source(%32 : memref<1x64xf32, #tpu.memory_space<any>>) target(%33 : memref<1x64xf32, #tpu.memory_space<vmem>>) target_semaphore(%35 : memref<!tpu.dma_semaphore, #tpu.memory_space<semaphore_mem>>)
    %c5_i32 = arith.constant 5 : i32
    %36 = arith.addi %0, %c5_i32 : i32
    %37 = arith.index_cast %36 : i32 to index
    %38 = memref.load %arg1[%37] : memref<16xi32, #tpu.memory_space<smem>>
    %c5_i32_20 = arith.constant 5 : i32
    %c0_i32_21 = arith.constant 0 : i32
    %39 = tpu.memref_slice %arg2[%38, %c0_i32_21] : memref<200x64xf32, #tpu.memory_space<any>> -> memref<1x64xf32, #tpu.memory_space<any>>
    %c5_i32_22 = arith.constant 5 : i32
    %c0_i32_23 = arith.constant 0 : i32
    %40 = tpu.memref_slice %arg6[%c5_i32_22, %c0_i32_23] : memref<16x64xf32, #tpu.memory_space<vmem>> -> memref<1x64xf32, #tpu.memory_space<vmem>>
    %41 = tpu.memref_slice %arg7[%c5_i32_20] : memref<16x!tpu.dma_semaphore, #tpu.memory_space<semaphore_mem>> -> memref<1x!tpu.dma_semaphore, #tpu.memory_space<semaphore_mem>>
    %42 = tpu.memref_squeeze %41 : memref<1x!tpu.dma_semaphore, #tpu.memory_space<semaphore_mem>> -> memref<!tpu.dma_semaphore, #tpu.memory_space<semaphore_mem>>
    tpu.enqueue_dma source(%39 : memref<1x64xf32, #tpu.memory_space<any>>) target(%40 : memref<1x64xf32, #tpu.memory_space<vmem>>) target_semaphore(%42 : memref<!tpu.dma_semaphore, #tpu.memory_space<semaphore_mem>>)
    %c6_i32 = arith.constant 6 : i32
    %43 = arith.addi %0, %c6_i32 : i32
    %44 = arith.index_cast %43 : i32 to index
    %45 = memref.load %arg1[%44] : memref<16xi32, #tpu.memory_space<smem>>
    %c6_i32_24 = arith.constant 6 : i32
    %c0_i32_25 = arith.constant 0 : i32
    %46 = tpu.memref_slice %arg2[%45, %c0_i32_25] : memref<200x64xf32, #tpu.memory_space<any>> -> memref<1x64xf32, #tpu.memory_space<any>>
    %c6_i32_26 = arith.constant 6 : i32
    %c0_i32_27 = arith.constant 0 : i32
    %47 = tpu.memref_slice %arg6[%c6_i32_26, %c0_i32_27] : memref<16x64xf32, #tpu.memory_space<vmem>> -> memref<1x64xf32, #tpu.memory_space<vmem>>
    %48 = tpu.memref_slice %arg7[%c6_i32_24] : memref<16x!tpu.dma_semaphore, #tpu.memory_space<semaphore_mem>> -> memref<1x!tpu.dma_semaphore, #tpu.memory_space<semaphore_mem>>
    %49 = tpu.memref_squeeze %48 : memref<1x!tpu.dma_semaphore, #tpu.memory_space<semaphore_mem>> -> memref<!tpu.dma_semaphore, #tpu.memory_space<semaphore_mem>>
    tpu.enqueue_dma source(%46 : memref<1x64xf32, #tpu.memory_space<any>>) target(%47 : memref<1x64xf32, #tpu.memory_space<vmem>>) target_semaphore(%49 : memref<!tpu.dma_semaphore, #tpu.memory_space<semaphore_mem>>)
    %c7_i32 = arith.constant 7 : i32
    %50 = arith.addi %0, %c7_i32 : i32
    %51 = arith.index_cast %50 : i32 to index
    %52 = memref.load %arg1[%51] : memref<16xi32, #tpu.memory_space<smem>>
    %c7_i32_28 = arith.constant 7 : i32
    %c0_i32_29 = arith.constant 0 : i32
    %53 = tpu.memref_slice %arg2[%52, %c0_i32_29] : memref<200x64xf32, #tpu.memory_space<any>> -> memref<1x64xf32, #tpu.memory_space<any>>
    %c7_i32_30 = arith.constant 7 : i32
    %c0_i32_31 = arith.constant 0 : i32
    %54 = tpu.memref_slice %arg6[%c7_i32_30, %c0_i32_31] : memref<16x64xf32, #tpu.memory_space<vmem>> -> memref<1x64xf32, #tpu.memory_space<vmem>>
    %55 = tpu.memref_slice %arg7[%c7_i32_28] : memref<16x!tpu.dma_semaphore, #tpu.memory_space<semaphore_mem>> -> memref<1x!tpu.dma_semaphore, #tpu.memory_space<semaphore_mem>>
    %56 = tpu.memref_squeeze %55 : memref<1x!tpu.dma_semaphore, #tpu.memory_space<semaphore_mem>> -> memref<!tpu.dma_semaphore, #tpu.memory_space<semaphore_mem>>
    tpu.enqueue_dma source(%53 : memref<1x64xf32, #tpu.memory_space<any>>) target(%54 : memref<1x64xf32, #tpu.memory_space<vmem>>) target_semaphore(%56 : memref<!tpu.dma_semaphore, #tpu.memory_space<semaphore_mem>>)
    %c8_i32 = arith.constant 8 : i32
    %57 = arith.addi %0, %c8_i32 : i32
    %58 = arith.index_cast %57 : i32 to index
    %59 = memref.load %arg1[%58] : memref<16xi32, #tpu.memory_space<smem>>
    %c8_i32_32 = arith.constant 8 : i32
    %c0_i32_33 = arith.constant 0 : i32
    %60 = tpu.memref_slice %arg2[%59, %c0_i32_33] : memref<200x64xf32, #tpu.memory_space<any>> -> memref<1x64xf32, #tpu.memory_space<any>>
    %c8_i32_34 = arith.constant 8 : i32
    %c0_i32_35 = arith.constant 0 : i32
    %61 = tpu.memref_slice %arg6[%c8_i32_34, %c0_i32_35] : memref<16x64xf32, #tpu.memory_space<vmem>> -> memref<1x64xf32, #tpu.memory_space<vmem>>
    %62 = tpu.memref_slice %arg7[%c8_i32_32] : memref<16x!tpu.dma_semaphore, #tpu.memory_space<semaphore_mem>> -> memref<1x!tpu.dma_semaphore, #tpu.memory_space<semaphore_mem>>
    %63 = tpu.memref_squeeze %62 : memref<1x!tpu.dma_semaphore, #tpu.memory_space<semaphore_mem>> -> memref<!tpu.dma_semaphore, #tpu.memory_space<semaphore_mem>>
    tpu.enqueue_dma source(%60 : memref<1x64xf32, #tpu.memory_space<any>>) target(%61 : memref<1x64xf32, #tpu.memory_space<vmem>>) target_semaphore(%63 : memref<!tpu.dma_semaphore, #tpu.memory_space<semaphore_mem>>)
    %c9_i32 = arith.constant 9 : i32
    %64 = arith.addi %0, %c9_i32 : i32
    %65 = arith.index_cast %64 : i32 to index
    %66 = memref.load %arg1[%65] : memref<16xi32, #tpu.memory_space<smem>>
    %c9_i32_36 = arith.constant 9 : i32
    %c0_i32_37 = arith.constant 0 : i32
    %67 = tpu.memref_slice %arg2[%66, %c0_i32_37] : memref<200x64xf32, #tpu.memory_space<any>> -> memref<1x64xf32, #tpu.memory_space<any>>
    %c9_i32_38 = arith.constant 9 : i32
    %c0_i32_39 = arith.constant 0 : i32
    %68 = tpu.memref_slice %arg6[%c9_i32_38, %c0_i32_39] : memref<16x64xf32, #tpu.memory_space<vmem>> -> memref<1x64xf32, #tpu.memory_space<vmem>>
    %69 = tpu.memref_slice %arg7[%c9_i32_36] : memref<16x!tpu.dma_semaphore, #tpu.memory_space<semaphore_mem>> -> memref<1x!tpu.dma_semaphore, #tpu.memory_space<semaphore_mem>>
    %70 = tpu.memref_squeeze %69 : memref<1x!tpu.dma_semaphore, #tpu.memory_space<semaphore_mem>> -> memref<!tpu.dma_semaphore, #tpu.memory_space<semaphore_mem>>
    tpu.enqueue_dma source(%67 : memref<1x64xf32, #tpu.memory_space<any>>) target(%68 : memref<1x64xf32, #tpu.memory_space<vmem>>) target_semaphore(%70 : memref<!tpu.dma_semaphore, #tpu.memory_space<semaphore_mem>>)
    %c10_i32 = arith.constant 10 : i32
    %71 = arith.addi %0, %c10_i32 : i32
    %72 = arith.index_cast %71 : i32 to index
    %73 = memref.load %arg1[%72] : memref<16xi32, #tpu.memory_space<smem>>
    %c10_i32_40 = arith.constant 10 : i32
    %c0_i32_41 = arith.constant 0 : i32
    %74 = tpu.memref_slice %arg2[%73, %c0_i32_41] : memref<200x64xf32, #tpu.memory_space<any>> -> memref<1x64xf32, #tpu.memory_space<any>>
    %c10_i32_42 = arith.constant 10 : i32
    %c0_i32_43 = arith.constant 0 : i32
    %75 = tpu.memref_slice %arg6[%c10_i32_42, %c0_i32_43] : memref<16x64xf32, #tpu.memory_space<vmem>> -> memref<1x64xf32, #tpu.memory_space<vmem>>
    %76 = tpu.memref_slice %arg7[%c10_i32_40] : memref<16x!tpu.dma_semaphore, #tpu.memory_space<semaphore_mem>> -> memref<1x!tpu.dma_semaphore, #tpu.memory_space<semaphore_mem>>
    %77 = tpu.memref_squeeze %76 : memref<1x!tpu.dma_semaphore, #tpu.memory_space<semaphore_mem>> -> memref<!tpu.dma_semaphore, #tpu.memory_space<semaphore_mem>>
    tpu.enqueue_dma source(%74 : memref<1x64xf32, #tpu.memory_space<any>>) target(%75 : memref<1x64xf32, #tpu.memory_space<vmem>>) target_semaphore(%77 : memref<!tpu.dma_semaphore, #tpu.memory_space<semaphore_mem>>)
    %c11_i32 = arith.constant 11 : i32
    %78 = arith.addi %0, %c11_i32 : i32
    %79 = arith.index_cast %78 : i32 to index
    %80 = memref.load %arg1[%79] : memref<16xi32, #tpu.memory_space<smem>>
    %c11_i32_44 = arith.constant 11 : i32
    %c0_i32_45 = arith.constant 0 : i32
    %81 = tpu.memref_slice %arg2[%80, %c0_i32_45] : memref<200x64xf32, #tpu.memory_space<any>> -> memref<1x64xf32, #tpu.memory_space<any>>
    %c11_i32_46 = arith.constant 11 : i32
    %c0_i32_47 = arith.constant 0 : i32
    %82 = tpu.memref_slice %arg6[%c11_i32_46, %c0_i32_47] : memref<16x64xf32, #tpu.memory_space<vmem>> -> memref<1x64xf32, #tpu.memory_space<vmem>>
    %83 = tpu.memref_slice %arg7[%c11_i32_44] : memref<16x!tpu.dma_semaphore, #tpu.memory_space<semaphore_mem>> -> memref<1x!tpu.dma_semaphore, #tpu.memory_space<semaphore_mem>>
    %84 = tpu.memref_squeeze %83 : memref<1x!tpu.dma_semaphore, #tpu.memory_space<semaphore_mem>> -> memref<!tpu.dma_semaphore, #tpu.memory_space<semaphore_mem>>
    tpu.enqueue_dma source(%81 : memref<1x64xf32, #tpu.memory_space<any>>) target(%82 : memref<1x64xf32, #tpu.memory_space<vmem>>) target_semaphore(%84 : memref<!tpu.dma_semaphore, #tpu.memory_space<semaphore_mem>>)
    %c12_i32 = arith.constant 12 : i32
    %85 = arith.addi %0, %c12_i32 : i32
    %86 = arith.index_cast %85 : i32 to index
    %87 = memref.load %arg1[%86] : memref<16xi32, #tpu.memory_space<smem>>
    %c12_i32_48 = arith.constant 12 : i32
    %c0_i32_49 = arith.constant 0 : i32
    %88 = tpu.memref_slice %arg2[%87, %c0_i32_49] : memref<200x64xf32, #tpu.memory_space<any>> -> memref<1x64xf32, #tpu.memory_space<any>>
    %c12_i32_50 = arith.constant 12 : i32
    %c0_i32_51 = arith.constant 0 : i32
    %89 = tpu.memref_slice %arg6[%c12_i32_50, %c0_i32_51] : memref<16x64xf32, #tpu.memory_space<vmem>> -> memref<1x64xf32, #tpu.memory_space<vmem>>
    %90 = tpu.memref_slice %arg7[%c12_i32_48] : memref<16x!tpu.dma_semaphore, #tpu.memory_space<semaphore_mem>> -> memref<1x!tpu.dma_semaphore, #tpu.memory_space<semaphore_mem>>
    %91 = tpu.memref_squeeze %90 : memref<1x!tpu.dma_semaphore, #tpu.memory_space<semaphore_mem>> -> memref<!tpu.dma_semaphore, #tpu.memory_space<semaphore_mem>>
    tpu.enqueue_dma source(%88 : memref<1x64xf32, #tpu.memory_space<any>>) target(%89 : memref<1x64xf32, #tpu.memory_space<vmem>>) target_semaphore(%91 : memref<!tpu.dma_semaphore, #tpu.memory_space<semaphore_mem>>)
    %c13_i32 = arith.constant 13 : i32
    %92 = arith.addi %0, %c13_i32 : i32
    %93 = arith.index_cast %92 : i32 to index
    %94 = memref.load %arg1[%93] : memref<16xi32, #tpu.memory_space<smem>>
    %c13_i32_52 = arith.constant 13 : i32
    %c0_i32_53 = arith.constant 0 : i32
    %95 = tpu.memref_slice %arg2[%94, %c0_i32_53] : memref<200x64xf32, #tpu.memory_space<any>> -> memref<1x64xf32, #tpu.memory_space<any>>
    %c13_i32_54 = arith.constant 13 : i32
    %c0_i32_55 = arith.constant 0 : i32
    %96 = tpu.memref_slice %arg6[%c13_i32_54, %c0_i32_55] : memref<16x64xf32, #tpu.memory_space<vmem>> -> memref<1x64xf32, #tpu.memory_space<vmem>>
    %97 = tpu.memref_slice %arg7[%c13_i32_52] : memref<16x!tpu.dma_semaphore, #tpu.memory_space<semaphore_mem>> -> memref<1x!tpu.dma_semaphore, #tpu.memory_space<semaphore_mem>>
    %98 = tpu.memref_squeeze %97 : memref<1x!tpu.dma_semaphore, #tpu.memory_space<semaphore_mem>> -> memref<!tpu.dma_semaphore, #tpu.memory_space<semaphore_mem>>
    tpu.enqueue_dma source(%95 : memref<1x64xf32, #tpu.memory_space<any>>) target(%96 : memref<1x64xf32, #tpu.memory_space<vmem>>) target_semaphore(%98 : memref<!tpu.dma_semaphore, #tpu.memory_space<semaphore_mem>>)
    %c14_i32 = arith.constant 14 : i32
    %99 = arith.addi %0, %c14_i32 : i32
    %100 = arith.index_cast %99 : i32 to index
    %101 = memref.load %arg1[%100] : memref<16xi32, #tpu.memory_space<smem>>
    %c14_i32_56 = arith.constant 14 : i32
    %c0_i32_57 = arith.constant 0 : i32
    %102 = tpu.memref_slice %arg2[%101, %c0_i32_57] : memref<200x64xf32, #tpu.memory_space<any>> -> memref<1x64xf32, #tpu.memory_space<any>>
    %c14_i32_58 = arith.constant 14 : i32
    %c0_i32_59 = arith.constant 0 : i32
    %103 = tpu.memref_slice %arg6[%c14_i32_58, %c0_i32_59] : memref<16x64xf32, #tpu.memory_space<vmem>> -> memref<1x64xf32, #tpu.memory_space<vmem>>
    %104 = tpu.memref_slice %arg7[%c14_i32_56] : memref<16x!tpu.dma_semaphore, #tpu.memory_space<semaphore_mem>> -> memref<1x!tpu.dma_semaphore, #tpu.memory_space<semaphore_mem>>
    %105 = tpu.memref_squeeze %104 : memref<1x!tpu.dma_semaphore, #tpu.memory_space<semaphore_mem>> -> memref<!tpu.dma_semaphore, #tpu.memory_space<semaphore_mem>>
    tpu.enqueue_dma source(%102 : memref<1x64xf32, #tpu.memory_space<any>>) target(%103 : memref<1x64xf32, #tpu.memory_space<vmem>>) target_semaphore(%105 : memref<!tpu.dma_semaphore, #tpu.memory_space<semaphore_mem>>)
    %c15_i32 = arith.constant 15 : i32
    %106 = arith.addi %0, %c15_i32 : i32
    %107 = arith.index_cast %106 : i32 to index
    %108 = memref.load %arg1[%107] : memref<16xi32, #tpu.memory_space<smem>>
    %c15_i32_60 = arith.constant 15 : i32
    %c0_i32_61 = arith.constant 0 : i32
    %109 = tpu.memref_slice %arg2[%108, %c0_i32_61] : memref<200x64xf32, #tpu.memory_space<any>> -> memref<1x64xf32, #tpu.memory_space<any>>
    %c15_i32_62 = arith.constant 15 : i32
    %c0_i32_63 = arith.constant 0 : i32
    %110 = tpu.memref_slice %arg6[%c15_i32_62, %c0_i32_63] : memref<16x64xf32, #tpu.memory_space<vmem>> -> memref<1x64xf32, #tpu.memory_space<vmem>>
    %111 = tpu.memref_slice %arg7[%c15_i32_60] : memref<16x!tpu.dma_semaphore, #tpu.memory_space<semaphore_mem>> -> memref<1x!tpu.dma_semaphore, #tpu.memory_space<semaphore_mem>>
    %112 = tpu.memref_squeeze %111 : memref<1x!tpu.dma_semaphore, #tpu.memory_space<semaphore_mem>> -> memref<!tpu.dma_semaphore, #tpu.memory_space<semaphore_mem>>
    tpu.enqueue_dma source(%109 : memref<1x64xf32, #tpu.memory_space<any>>) target(%110 : memref<1x64xf32, #tpu.memory_space<vmem>>) target_semaphore(%112 : memref<!tpu.dma_semaphore, #tpu.memory_space<semaphore_mem>>)
    %c0_i32_64 = arith.constant 0 : i32
    %c0_i32_65 = arith.constant 0 : i32
    %c0_i32_66 = arith.constant 0 : i32
    %113 = tpu.memref_slice %arg2[%c0_i32_65, %c0_i32_66] : memref<200x64xf32, #tpu.memory_space<any>> -> memref<1x64xf32, #tpu.memory_space<any>>
    %c0_i32_67 = arith.constant 0 : i32
    %c0_i32_68 = arith.constant 0 : i32
    %114 = tpu.memref_slice %arg6[%c0_i32_67, %c0_i32_68] : memref<16x64xf32, #tpu.memory_space<vmem>> -> memref<1x64xf32, #tpu.memory_space<vmem>>
    %115 = tpu.memref_slice %arg7[%c0_i32_64] : memref<16x!tpu.dma_semaphore, #tpu.memory_space<semaphore_mem>> -> memref<1x!tpu.dma_semaphore, #tpu.memory_space<semaphore_mem>>
    %116 = tpu.memref_squeeze %115 : memref<1x!tpu.dma_semaphore, #tpu.memory_space<semaphore_mem>> -> memref<!tpu.dma_semaphore, #tpu.memory_space<semaphore_mem>>
    tpu.wait_dma2 semaphore(%116 : memref<!tpu.dma_semaphore, #tpu.memory_space<semaphore_mem>>) src(%113 : memref<1x64xf32, #tpu.memory_space<any>>) dst(%114 : memref<1x64xf32, #tpu.memory_space<vmem>>)
    %c1_i32_69 = arith.constant 1 : i32
    %c0_i32_70 = arith.constant 0 : i32
    %c0_i32_71 = arith.constant 0 : i32
    %117 = tpu.memref_slice %arg2[%c0_i32_70, %c0_i32_71] : memref<200x64xf32, #tpu.memory_space<any>> -> memref<1x64xf32, #tpu.memory_space<any>>
    %c1_i32_72 = arith.constant 1 : i32
    %c0_i32_73 = arith.constant 0 : i32
    %118 = tpu.memref_slice %arg6[%c1_i32_72, %c0_i32_73] : memref<16x64xf32, #tpu.memory_space<vmem>> -> memref<1x64xf32, #tpu.memory_space<vmem>>
    %119 = tpu.memref_slice %arg7[%c1_i32_69] : memref<16x!tpu.dma_semaphore, #tpu.memory_space<semaphore_mem>> -> memref<1x!tpu.dma_semaphore, #tpu.memory_space<semaphore_mem>>
    %120 = tpu.memref_squeeze %119 : memref<1x!tpu.dma_semaphore, #tpu.memory_space<semaphore_mem>> -> memref<!tpu.dma_semaphore, #tpu.memory_space<semaphore_mem>>
    tpu.wait_dma2 semaphore(%120 : memref<!tpu.dma_semaphore, #tpu.memory_space<semaphore_mem>>) src(%117 : memref<1x64xf32, #tpu.memory_space<any>>) dst(%118 : memref<1x64xf32, #tpu.memory_space<vmem>>)
    %c2_i32_74 = arith.constant 2 : i32
    %c0_i32_75 = arith.constant 0 : i32
    %c0_i32_76 = arith.constant 0 : i32
    %121 = tpu.memref_slice %arg2[%c0_i32_75, %c0_i32_76] : memref<200x64xf32, #tpu.memory_space<any>> -> memref<1x64xf32, #tpu.memory_space<any>>
    %c2_i32_77 = arith.constant 2 : i32
    %c0_i32_78 = arith.constant 0 : i32
    %122 = tpu.memref_slice %arg6[%c2_i32_77, %c0_i32_78] : memref<16x64xf32, #tpu.memory_space<vmem>> -> memref<1x64xf32, #tpu.memory_space<vmem>>
    %123 = tpu.memref_slice %arg7[%c2_i32_74] : memref<16x!tpu.dma_semaphore, #tpu.memory_space<semaphore_mem>> -> memref<1x!tpu.dma_semaphore, #tpu.memory_space<semaphore_mem>>
    %124 = tpu.memref_squeeze %123 : memref<1x!tpu.dma_semaphore, #tpu.memory_space<semaphore_mem>> -> memref<!tpu.dma_semaphore, #tpu.memory_space<semaphore_mem>>
    tpu.wait_dma2 semaphore(%124 : memref<!tpu.dma_semaphore, #tpu.memory_space<semaphore_mem>>) src(%121 : memref<1x64xf32, #tpu.memory_space<any>>) dst(%122 : memref<1x64xf32, #tpu.memory_space<vmem>>)
    %c3_i32_79 = arith.constant 3 : i32
    %c0_i32_80 = arith.constant 0 : i32
    %c0_i32_81 = arith.constant 0 : i32
    %125 = tpu.memref_slice %arg2[%c0_i32_80, %c0_i32_81] : memref<200x64xf32, #tpu.memory_space<any>> -> memref<1x64xf32, #tpu.memory_space<any>>
    %c3_i32_82 = arith.constant 3 : i32
    %c0_i32_83 = arith.constant 0 : i32
    %126 = tpu.memref_slice %arg6[%c3_i32_82, %c0_i32_83] : memref<16x64xf32, #tpu.memory_space<vmem>> -> memref<1x64xf32, #tpu.memory_space<vmem>>
    %127 = tpu.memref_slice %arg7[%c3_i32_79] : memref<16x!tpu.dma_semaphore, #tpu.memory_space<semaphore_mem>> -> memref<1x!tpu.dma_semaphore, #tpu.memory_space<semaphore_mem>>
    %128 = tpu.memref_squeeze %127 : memref<1x!tpu.dma_semaphore, #tpu.memory_space<semaphore_mem>> -> memref<!tpu.dma_semaphore, #tpu.memory_space<semaphore_mem>>
    tpu.wait_dma2 semaphore(%128 : memref<!tpu.dma_semaphore, #tpu.memory_space<semaphore_mem>>) src(%125 : memref<1x64xf32, #tpu.memory_space<any>>) dst(%126 : memref<1x64xf32, #tpu.memory_space<vmem>>)
    %c4_i32_84 = arith.constant 4 : i32
    %c0_i32_85 = arith.constant 0 : i32
    %c0_i32_86 = arith.constant 0 : i32
    %129 = tpu.memref_slice %arg2[%c0_i32_85, %c0_i32_86] : memref<200x64xf32, #tpu.memory_space<any>> -> memref<1x64xf32, #tpu.memory_space<any>>
    %c4_i32_87 = arith.constant 4 : i32
    %c0_i32_88 = arith.constant 0 : i32
    %130 = tpu.memref_slice %arg6[%c4_i32_87, %c0_i32_88] : memref<16x64xf32, #tpu.memory_space<vmem>> -> memref<1x64xf32, #tpu.memory_space<vmem>>
    %131 = tpu.memref_slice %arg7[%c4_i32_84] : memref<16x!tpu.dma_semaphore, #tpu.memory_space<semaphore_mem>> -> memref<1x!tpu.dma_semaphore, #tpu.memory_space<semaphore_mem>>
    %132 = tpu.memref_squeeze %131 : memref<1x!tpu.dma_semaphore, #tpu.memory_space<semaphore_mem>> -> memref<!tpu.dma_semaphore, #tpu.memory_space<semaphore_mem>>
    tpu.wait_dma2 semaphore(%132 : memref<!tpu.dma_semaphore, #tpu.memory_space<semaphore_mem>>) src(%129 : memref<1x64xf32, #tpu.memory_space<any>>) dst(%130 : memref<1x64xf32, #tpu.memory_space<vmem>>)
    %c5_i32_89 = arith.constant 5 : i32
    %c0_i32_90 = arith.constant 0 : i32
    %c0_i32_91 = arith.constant 0 : i32
    %133 = tpu.memref_slice %arg2[%c0_i32_90, %c0_i32_91] : memref<200x64xf32, #tpu.memory_space<any>> -> memref<1x64xf32, #tpu.memory_space<any>>
    %c5_i32_92 = arith.constant 5 : i32
    %c0_i32_93 = arith.constant 0 : i32
    %134 = tpu.memref_slice %arg6[%c5_i32_92, %c0_i32_93] : memref<16x64xf32, #tpu.memory_space<vmem>> -> memref<1x64xf32, #tpu.memory_space<vmem>>
    %135 = tpu.memref_slice %arg7[%c5_i32_89] : memref<16x!tpu.dma_semaphore, #tpu.memory_space<semaphore_mem>> -> memref<1x!tpu.dma_semaphore, #tpu.memory_space<semaphore_mem>>
    %136 = tpu.memref_squeeze %135 : memref<1x!tpu.dma_semaphore, #tpu.memory_space<semaphore_mem>> -> memref<!tpu.dma_semaphore, #tpu.memory_space<semaphore_mem>>
    tpu.wait_dma2 semaphore(%136 : memref<!tpu.dma_semaphore, #tpu.memory_space<semaphore_mem>>) src(%133 : memref<1x64xf32, #tpu.memory_space<any>>) dst(%134 : memref<1x64xf32, #tpu.memory_space<vmem>>)
    %c6_i32_94 = arith.constant 6 : i32
    %c0_i32_95 = arith.constant 0 : i32
    %c0_i32_96 = arith.constant 0 : i32
    %137 = tpu.memref_slice %arg2[%c0_i32_95, %c0_i32_96] : memref<200x64xf32, #tpu.memory_space<any>> -> memref<1x64xf32, #tpu.memory_space<any>>
    %c6_i32_97 = arith.constant 6 : i32
    %c0_i32_98 = arith.constant 0 : i32
    %138 = tpu.memref_slice %arg6[%c6_i32_97, %c0_i32_98] : memref<16x64xf32, #tpu.memory_space<vmem>> -> memref<1x64xf32, #tpu.memory_space<vmem>>
    %139 = tpu.memref_slice %arg7[%c6_i32_94] : memref<16x!tpu.dma_semaphore, #tpu.memory_space<semaphore_mem>> -> memref<1x!tpu.dma_semaphore, #tpu.memory_space<semaphore_mem>>
    %140 = tpu.memref_squeeze %139 : memref<1x!tpu.dma_semaphore, #tpu.memory_space<semaphore_mem>> -> memref<!tpu.dma_semaphore, #tpu.memory_space<semaphore_mem>>
    tpu.wait_dma2 semaphore(%140 : memref<!tpu.dma_semaphore, #tpu.memory_space<semaphore_mem>>) src(%137 : memref<1x64xf32, #tpu.memory_space<any>>) dst(%138 : memref<1x64xf32, #tpu.memory_space<vmem>>)
    %c7_i32_99 = arith.constant 7 : i32
    %c0_i32_100 = arith.constant 0 : i32
    %c0_i32_101 = arith.constant 0 : i32
    %141 = tpu.memref_slice %arg2[%c0_i32_100, %c0_i32_101] : memref<200x64xf32, #tpu.memory_space<any>> -> memref<1x64xf32, #tpu.memory_space<any>>
    %c7_i32_102 = arith.constant 7 : i32
    %c0_i32_103 = arith.constant 0 : i32
    %142 = tpu.memref_slice %arg6[%c7_i32_102, %c0_i32_103] : memref<16x64xf32, #tpu.memory_space<vmem>> -> memref<1x64xf32, #tpu.memory_space<vmem>>
    %143 = tpu.memref_slice %arg7[%c7_i32_99] : memref<16x!tpu.dma_semaphore, #tpu.memory_space<semaphore_mem>> -> memref<1x!tpu.dma_semaphore, #tpu.memory_space<semaphore_mem>>
    %144 = tpu.memref_squeeze %143 : memref<1x!tpu.dma_semaphore, #tpu.memory_space<semaphore_mem>> -> memref<!tpu.dma_semaphore, #tpu.memory_space<semaphore_mem>>
    tpu.wait_dma2 semaphore(%144 : memref<!tpu.dma_semaphore, #tpu.memory_space<semaphore_mem>>) src(%141 : memref<1x64xf32, #tpu.memory_space<any>>) dst(%142 : memref<1x64xf32, #tpu.memory_space<vmem>>)
    %c8_i32_104 = arith.constant 8 : i32
    %c0_i32_105 = arith.constant 0 : i32
    %c0_i32_106 = arith.constant 0 : i32
    %145 = tpu.memref_slice %arg2[%c0_i32_105, %c0_i32_106] : memref<200x64xf32, #tpu.memory_space<any>> -> memref<1x64xf32, #tpu.memory_space<any>>
    %c8_i32_107 = arith.constant 8 : i32
    %c0_i32_108 = arith.constant 0 : i32
    %146 = tpu.memref_slice %arg6[%c8_i32_107, %c0_i32_108] : memref<16x64xf32, #tpu.memory_space<vmem>> -> memref<1x64xf32, #tpu.memory_space<vmem>>
    %147 = tpu.memref_slice %arg7[%c8_i32_104] : memref<16x!tpu.dma_semaphore, #tpu.memory_space<semaphore_mem>> -> memref<1x!tpu.dma_semaphore, #tpu.memory_space<semaphore_mem>>
    %148 = tpu.memref_squeeze %147 : memref<1x!tpu.dma_semaphore, #tpu.memory_space<semaphore_mem>> -> memref<!tpu.dma_semaphore, #tpu.memory_space<semaphore_mem>>
    tpu.wait_dma2 semaphore(%148 : memref<!tpu.dma_semaphore, #tpu.memory_space<semaphore_mem>>) src(%145 : memref<1x64xf32, #tpu.memory_space<any>>) dst(%146 : memref<1x64xf32, #tpu.memory_space<vmem>>)
    %c9_i32_109 = arith.constant 9 : i32
    %c0_i32_110 = arith.constant 0 : i32
    %c0_i32_111 = arith.constant 0 : i32
    %149 = tpu.memref_slice %arg2[%c0_i32_110, %c0_i32_111] : memref<200x64xf32, #tpu.memory_space<any>> -> memref<1x64xf32, #tpu.memory_space<any>>
    %c9_i32_112 = arith.constant 9 : i32
    %c0_i32_113 = arith.constant 0 : i32
    %150 = tpu.memref_slice %arg6[%c9_i32_112, %c0_i32_113] : memref<16x64xf32, #tpu.memory_space<vmem>> -> memref<1x64xf32, #tpu.memory_space<vmem>>
    %151 = tpu.memref_slice %arg7[%c9_i32_109] : memref<16x!tpu.dma_semaphore, #tpu.memory_space<semaphore_mem>> -> memref<1x!tpu.dma_semaphore, #tpu.memory_space<semaphore_mem>>
    %152 = tpu.memref_squeeze %151 : memref<1x!tpu.dma_semaphore, #tpu.memory_space<semaphore_mem>> -> memref<!tpu.dma_semaphore, #tpu.memory_space<semaphore_mem>>
    tpu.wait_dma2 semaphore(%152 : memref<!tpu.dma_semaphore, #tpu.memory_space<semaphore_mem>>) src(%149 : memref<1x64xf32, #tpu.memory_space<any>>) dst(%150 : memref<1x64xf32, #tpu.memory_space<vmem>>)
    %c10_i32_114 = arith.constant 10 : i32
    %c0_i32_115 = arith.constant 0 : i32
    %c0_i32_116 = arith.constant 0 : i32
    %153 = tpu.memref_slice %arg2[%c0_i32_115, %c0_i32_116] : memref<200x64xf32, #tpu.memory_space<any>> -> memref<1x64xf32, #tpu.memory_space<any>>
    %c10_i32_117 = arith.constant 10 : i32
    %c0_i32_118 = arith.constant 0 : i32
    %154 = tpu.memref_slice %arg6[%c10_i32_117, %c0_i32_118] : memref<16x64xf32, #tpu.memory_space<vmem>> -> memref<1x64xf32, #tpu.memory_space<vmem>>
    %155 = tpu.memref_slice %arg7[%c10_i32_114] : memref<16x!tpu.dma_semaphore, #tpu.memory_space<semaphore_mem>> -> memref<1x!tpu.dma_semaphore, #tpu.memory_space<semaphore_mem>>
    %156 = tpu.memref_squeeze %155 : memref<1x!tpu.dma_semaphore, #tpu.memory_space<semaphore_mem>> -> memref<!tpu.dma_semaphore, #tpu.memory_space<semaphore_mem>>
    tpu.wait_dma2 semaphore(%156 : memref<!tpu.dma_semaphore, #tpu.memory_space<semaphore_mem>>) src(%153 : memref<1x64xf32, #tpu.memory_space<any>>) dst(%154 : memref<1x64xf32, #tpu.memory_space<vmem>>)
    %c11_i32_119 = arith.constant 11 : i32
    %c0_i32_120 = arith.constant 0 : i32
    %c0_i32_121 = arith.constant 0 : i32
    %157 = tpu.memref_slice %arg2[%c0_i32_120, %c0_i32_121] : memref<200x64xf32, #tpu.memory_space<any>> -> memref<1x64xf32, #tpu.memory_space<any>>
    %c11_i32_122 = arith.constant 11 : i32
    %c0_i32_123 = arith.constant 0 : i32
    %158 = tpu.memref_slice %arg6[%c11_i32_122, %c0_i32_123] : memref<16x64xf32, #tpu.memory_space<vmem>> -> memref<1x64xf32, #tpu.memory_space<vmem>>
    %159 = tpu.memref_slice %arg7[%c11_i32_119] : memref<16x!tpu.dma_semaphore, #tpu.memory_space<semaphore_mem>> -> memref<1x!tpu.dma_semaphore, #tpu.memory_space<semaphore_mem>>
    %160 = tpu.memref_squeeze %159 : memref<1x!tpu.dma_semaphore, #tpu.memory_space<semaphore_mem>> -> memref<!tpu.dma_semaphore, #tpu.memory_space<semaphore_mem>>
    tpu.wait_dma2 semaphore(%160 : memref<!tpu.dma_semaphore, #tpu.memory_space<semaphore_mem>>) src(%157 : memref<1x64xf32, #tpu.memory_space<any>>) dst(%158 : memref<1x64xf32, #tpu.memory_space<vmem>>)
    %c12_i32_124 = arith.constant 12 : i32
    %c0_i32_125 = arith.constant 0 : i32
    %c0_i32_126 = arith.constant 0 : i32
    %161 = tpu.memref_slice %arg2[%c0_i32_125, %c0_i32_126] : memref<200x64xf32, #tpu.memory_space<any>> -> memref<1x64xf32, #tpu.memory_space<any>>
    %c12_i32_127 = arith.constant 12 : i32
    %c0_i32_128 = arith.constant 0 : i32
    %162 = tpu.memref_slice %arg6[%c12_i32_127, %c0_i32_128] : memref<16x64xf32, #tpu.memory_space<vmem>> -> memref<1x64xf32, #tpu.memory_space<vmem>>
    %163 = tpu.memref_slice %arg7[%c12_i32_124] : memref<16x!tpu.dma_semaphore, #tpu.memory_space<semaphore_mem>> -> memref<1x!tpu.dma_semaphore, #tpu.memory_space<semaphore_mem>>
    %164 = tpu.memref_squeeze %163 : memref<1x!tpu.dma_semaphore, #tpu.memory_space<semaphore_mem>> -> memref<!tpu.dma_semaphore, #tpu.memory_space<semaphore_mem>>
    tpu.wait_dma2 semaphore(%164 : memref<!tpu.dma_semaphore, #tpu.memory_space<semaphore_mem>>) src(%161 : memref<1x64xf32, #tpu.memory_space<any>>) dst(%162 : memref<1x64xf32, #tpu.memory_space<vmem>>)
    %c13_i32_129 = arith.constant 13 : i32
    %c0_i32_130 = arith.constant 0 : i32
    %c0_i32_131 = arith.constant 0 : i32
    %165 = tpu.memref_slice %arg2[%c0_i32_130, %c0_i32_131] : memref<200x64xf32, #tpu.memory_space<any>> -> memref<1x64xf32, #tpu.memory_space<any>>
    %c13_i32_132 = arith.constant 13 : i32
    %c0_i32_133 = arith.constant 0 : i32
    %166 = tpu.memref_slice %arg6[%c13_i32_132, %c0_i32_133] : memref<16x64xf32, #tpu.memory_space<vmem>> -> memref<1x64xf32, #tpu.memory_space<vmem>>
    %167 = tpu.memref_slice %arg7[%c13_i32_129] : memref<16x!tpu.dma_semaphore, #tpu.memory_space<semaphore_mem>> -> memref<1x!tpu.dma_semaphore, #tpu.memory_space<semaphore_mem>>
    %168 = tpu.memref_squeeze %167 : memref<1x!tpu.dma_semaphore, #tpu.memory_space<semaphore_mem>> -> memref<!tpu.dma_semaphore, #tpu.memory_space<semaphore_mem>>
    tpu.wait_dma2 semaphore(%168 : memref<!tpu.dma_semaphore, #tpu.memory_space<semaphore_mem>>) src(%165 : memref<1x64xf32, #tpu.memory_space<any>>) dst(%166 : memref<1x64xf32, #tpu.memory_space<vmem>>)
    %c14_i32_134 = arith.constant 14 : i32
    %c0_i32_135 = arith.constant 0 : i32
    %c0_i32_136 = arith.constant 0 : i32
    %169 = tpu.memref_slice %arg2[%c0_i32_135, %c0_i32_136] : memref<200x64xf32, #tpu.memory_space<any>> -> memref<1x64xf32, #tpu.memory_space<any>>
    %c14_i32_137 = arith.constant 14 : i32
    %c0_i32_138 = arith.constant 0 : i32
    %170 = tpu.memref_slice %arg6[%c14_i32_137, %c0_i32_138] : memref<16x64xf32, #tpu.memory_space<vmem>> -> memref<1x64xf32, #tpu.memory_space<vmem>>
    %171 = tpu.memref_slice %arg7[%c14_i32_134] : memref<16x!tpu.dma_semaphore, #tpu.memory_space<semaphore_mem>> -> memref<1x!tpu.dma_semaphore, #tpu.memory_space<semaphore_mem>>
    %172 = tpu.memref_squeeze %171 : memref<1x!tpu.dma_semaphore, #tpu.memory_space<semaphore_mem>> -> memref<!tpu.dma_semaphore, #tpu.memory_space<semaphore_mem>>
    tpu.wait_dma2 semaphore(%172 : memref<!tpu.dma_semaphore, #tpu.memory_space<semaphore_mem>>) src(%169 : memref<1x64xf32, #tpu.memory_space<any>>) dst(%170 : memref<1x64xf32, #tpu.memory_space<vmem>>)
    %c15_i32_139 = arith.constant 15 : i32
    %c0_i32_140 = arith.constant 0 : i32
    %c0_i32_141 = arith.constant 0 : i32
    %173 = tpu.memref_slice %arg2[%c0_i32_140, %c0_i32_141] : memref<200x64xf32, #tpu.memory_space<any>> -> memref<1x64xf32, #tpu.memory_space<any>>
    %c15_i32_142 = arith.constant 15 : i32
    %c0_i32_143 = arith.constant 0 : i32
    %174 = tpu.memref_slice %arg6[%c15_i32_142, %c0_i32_143] : memref<16x64xf32, #tpu.memory_space<vmem>> -> memref<1x64xf32, #tpu.memory_space<vmem>>
    %175 = tpu.memref_slice %arg7[%c15_i32_139] : memref<16x!tpu.dma_semaphore, #tpu.memory_space<semaphore_mem>> -> memref<1x!tpu.dma_semaphore, #tpu.memory_space<semaphore_mem>>
    %176 = tpu.memref_squeeze %175 : memref<1x!tpu.dma_semaphore, #tpu.memory_space<semaphore_mem>> -> memref<!tpu.dma_semaphore, #tpu.memory_space<semaphore_mem>>
    tpu.wait_dma2 semaphore(%176 : memref<!tpu.dma_semaphore, #tpu.memory_space<semaphore_mem>>) src(%173 : memref<1x64xf32, #tpu.memory_space<any>>) dst(%174 : memref<1x64xf32, #tpu.memory_space<vmem>>)
    %c0 = arith.constant 0 : index
    %c0_144 = arith.constant 0 : index
    %177 = vector.load %arg6[%c0, %c0_144] : memref<16x64xf32, #tpu.memory_space<vmem>>, vector<16x64xf32>
    %c0_145 = arith.constant 0 : index
    %c0_146 = arith.constant 0 : index
    %178 = vector.load %arg3[%c0_145, %c0_146] : memref<1x64xf32, #tpu.memory_space<vmem>>, vector<1x64xf32>
    %179 = vector.broadcast %178 : vector<1x64xf32> to vector<16x64xf32>
    %180 = arith.mulf %177, %179 : vector<16x64xf32>
    %cst = arith.constant dense<0.000000e+00> : vector<16xf32>
    %181 = vector.multi_reduction <add>, %180, %cst [1] : vector<16x64xf32> to vector<16xf32>
    %182 = vector.shape_cast %181 : vector<16xf32> to vector<16x1xf32>
    %c0_147 = arith.constant 0 : index
    %c0_148 = arith.constant 0 : index
    %183 = memref.load %arg4[%c0_147, %c0_148] : memref<1x1xf32, #tpu.memory_space<smem>>
    %184 = vector.broadcast %183 : f32 to vector<16x1xf32>
    %185 = arith.addf %182, %184 : vector<16x1xf32>
    %c0_149 = arith.constant 0 : index
    %c0_150 = arith.constant 0 : index
    %186 = vector.load %arg5[%c0_149, %c0_150] : memref<16x1xf32, #tpu.memory_space<vmem>>, vector<16x1xf32>
    tpu.vector_store %arg5[%c0_149, %c0_150], %185 {strides = array<i32>} : memref<16x1xf32, #tpu.memory_space<vmem>>, vector<16x1xf32>,
    return
  }
  func.func @transform_1(%arg0: i32, %arg1: memref<16xi32, #tpu.memory_space<smem>>) -> (i32, i32) {
    %c0_i32 = arith.constant 0 : i32
    %c0_i32_0 = arith.constant 0 : i32
    %c0_i32_1 = arith.constant 0 : i32
    return %c0_i32, %c0_i32_0 : i32, i32
  }
  func.func @transform_2(%arg0: i32, %arg1: memref<16xi32, #tpu.memory_space<smem>>) -> (i32, i32) {
    %c0_i32 = arith.constant 0 : i32
    %c0_i32_0 = arith.constant 0 : i32
    %c0_i32_1 = arith.constant 0 : i32
    return %c0_i32, %c0_i32_0 : i32, i32
  }
  func.func @transform_3(%arg0: i32, %arg1: memref<16xi32, #tpu.memory_space<smem>>) -> (i32, i32) {
    %c0_i32 = arith.constant 0 : i32
    %c0_i32_0 = arith.constant 0 : i32
    return %arg0, %c0_i32 : i32, i32
  }
}

</mosaic_0001>

<llo_original>
// kernel: mab_forward_gather.1
$region0: #{mab_forward_gather.1}
  #allocation0 [shape = 'u32[]', space=smem, size = 0x4, offset = 0x4, fixed_abs, tag = 'smem constant byte address 0x4 - core index']
  #allocation1 [shape = 'u32[144,128]{1,0:T(1,128)}', space=vmem, size = 0x12000, scoped, tag = 'internal scratch']
  #allocation2 [shape = 'f32[16,64]{1,0:T(8,128)}', space=vmem, size = 0x2000, scoped, tag = 'scratch operand']
  #allocation3 [shape = 's32[16]{0}', space=sflag, size = 0x40, scoped, tag = 'scratch operand']
  #allocation4 [shape = 's32[1]{0}', space=sflag, size = 0x4, scoped, tag = 'scoped memory for mab_forward_gather.1']
  #allocation5 [shape = 'u8[512]{0}', space=smem, size = 0x200, scoped, tag = 'prefetched SMEM operand 0']
  #allocation6 [shape = 'f32[1,1]{1,0:T(1,128)S(6)}', space=smem, size = 0x200, scoped, tag = 'scoped memory for mab_forward_gather.1']
  #allocation7 [shape = 's32[]', space=sflag, size = 0x4, offset = 0, fixed_abs, tag = 'sflag constant byte address 0x0 - dummy sync flag']
  #allocation8 [shape = 's32[]', space=sflag, size = 0x4, offset = 0, fixed_abs, tag = 'sflag constant byte address 0x0 - dummy sync flag']
  #allocation9 [shape = 's32[]', space=sflag, size = 0x4, offset = 0, fixed_abs, tag = 'sflag constant byte address 0x0 - dummy sync flag']
  #allocation10 [shape = 's32[]', space=sflag, size = 0x4, offset = 0, fixed_abs, tag = 'sflag constant byte address 0x0 - dummy sync flag']
  #allocation11 [shape = 's32[]', space=sflag, size = 0x4, offset = 0, fixed_abs, tag = 'sflag constant byte address 0x0 - dummy sync flag']
  #allocation12 [shape = 's32[]', space=sflag, size = 0x4, offset = 0, fixed_abs, tag = 'sflag constant byte address 0x0 - dummy sync flag']
  #allocation13 [shape = 's32[]', space=sflag, size = 0x4, offset = 0, fixed_abs, tag = 'sflag constant byte address 0x0 - dummy sync flag']
  #allocation14 [shape = 's32[]', space=sflag, size = 0x4, offset = 0, fixed_abs, tag = 'sflag constant byte address 0x0 - dummy sync flag']
  #allocation15 [shape = 's32[]', space=sflag, size = 0x4, offset = 0, fixed_abs, tag = 'sflag constant byte address 0x0 - dummy sync flag']
  #allocation16 [shape = 's32[]', space=sflag, size = 0x4, offset = 0, fixed_abs, tag = 'sflag constant byte address 0x0 - dummy sync flag']
  #allocation17 [shape = 's32[]', space=sflag, size = 0x4, offset = 0, fixed_abs, tag = 'sflag constant byte address 0x0 - dummy sync flag']
  #allocation18 [shape = 's32[]', space=sflag, size = 0x4, offset = 0, fixed_abs, tag = 'sflag constant byte address 0x0 - dummy sync flag']
  #allocation19 [shape = 's32[]', space=sflag, size = 0x4, offset = 0, fixed_abs, tag = 'sflag constant byte address 0x0 - dummy sync flag']
  #allocation20 [shape = 's32[]', space=sflag, size = 0x4, offset = 0, fixed_abs, tag = 'sflag constant byte address 0x0 - dummy sync flag']
  #allocation21 [shape = 's32[]', space=sflag, size = 0x4, offset = 0, fixed_abs, tag = 'sflag constant byte address 0x0 - dummy sync flag']
  #allocation22 [shape = 's32[]', space=sflag, size = 0x4, offset = 0, fixed_abs, tag = 'sflag constant byte address 0x0 - dummy sync flag']
  %s0 = inlined_call_operand.vmem [shape: s32[16], index: 0, kind: input, shape index: {}]
  %s1 = inlined_call_operand.vmem [shape: f32[200,64], index: 1, kind: input, shape index: {}]
  %s2 = inlined_call_operand.vmem [shape: f32[1,64], index: 2, kind: input, shape index: {}]
  %s3 = inlined_call_operand.<no memory space> [shape: f32[1,1], index: 3, kind: input, shape index: {}]
  %s4 = inlined_call_operand.vmem [shape: f32[16,1], index: 4, kind: output, shape index: {}]
  %s5 = sld [smem:[#allocation0]]
  $region498: #{mab_forward_gather.1} parent=0
    _
  %s7 = ssub.s32 1, %s5
  %s8 = scalar_select 0, %s7, %s5
  %s9 = sshll.u32 %s0, 4
  %s10 = int_to_ptr.vmem [resolvable:$true] %s9
  %12 = dma.vmem_to_smem %s10, 16, [#allocation5], [#allocation4]
  %13 = sst [smem:[#allocation6]] %s3
  %14 = dma.done [#allocation4], 16
  %15 = sfence
  // Predicated region
  $region2: #{mab_forward_gather.1} parent=0 // pred_check
    _
  $region3: #{mab_forward_gather.1} parent=0 // pred_check_branch
    %17 = sbr.rel (0) target = $region5
  $region4: #{mab_forward_gather.1} parent=0 // pred_region
    _
  $region5: #{mab_forward_gather.1} parent=0 // pred_fallthru
    _
  // Predicated region
  $region6: #{mab_forward_gather.1} parent=0 // pred_check
    _
  $region7: #{mab_forward_gather.1} parent=0 // pred_check_branch
    %19 = sbr.rel (0) target = $region9
  $region8: #{mab_forward_gather.1} parent=0 // pred_region
    _
  $region9: #{mab_forward_gather.1} parent=0 // pred_fallthru
    _
  %s20 = smul.u32 0, 16
  %s21 = sld [smem:[#allocation5 + %s20]]
  %s22 = scalar_lea.vmem %s1, %s21
  %p24 = scmp.lt.u32.totalorder 1, 8
  %p25 = pneg %p24
  // Predicated region
  $region10: #{mab_forward_gather.1} parent=0 // pred_check
    _
  $region11: #{mab_forward_gather.1} parent=0 // pred_check_branch
    %27 = sbr.rel (%p24) target = $region13
  $region12: #{mab_forward_gather.1} parent=0 // pred_region
    %s43 = sand.u32 1, 7
    %p44 = scmp.eq.s32.totalorder %s43, 0
    %p45 = pneg %p44
    // Predicated region
    $region25: #{mab_forward_gather.1} parent=12 // pred_check
      _
    $region26: #{mab_forward_gather.1} parent=12 // pred_check_branch
      %47 = sbr.rel (%p44) target = $region28
    $region27: #{mab_forward_gather.1} parent=12 // pred_region
      %s48 = sand.u32 1, 7
      %s49 = ssub.s32 1, %s48
      %s50 = scalar_lea.vmem %s22, %s49
      %s51 = ssub.s32 1, %s48
      %s52 = scalar_lea.vmem [#allocation2], %s51
      %s53 = sshll.u32 1, %s48
      %s54 = ssub.s32 %s53, 1
      loop: start=0, step=1, limit=1
      $region29: #{mab_forward_gather.1} parent=27 // loop_pre_header
        _
      $region30: #{mab_forward_gather.1} parent=27 // loop_header
        %s56 = sphi 0, %s60
        %p57 = scmp.ge.s32.totalorder %s56, 1
        %s61 = sphi %s50, %s50
        %s62 = sphi %s52, %s52
      $region31: #{mab_forward_gather.1} parent=27 // loop_header_branch
        %59 = sbr.rel (%p57) target = $region35
      $region32: #{mab_forward_gather.1} parent=27 // loop_body
        %v63 = vld [vmem:[%s61] sm:%s54]
        %64 = vst [vmem:[%s62] sm:%s54] %v63
      $region33: #{mab_forward_gather.1} parent=27 // loop_footer
        %s60 = sadd.s32 1, %s56
      $region34: #{mab_forward_gather.1} parent=27 // loop_footer_branch
        %55 = sbr.rel target = $region30
      $region35: #{mab_forward_gather.1} parent=27 // loop_exit
        _
    $region28: #{mab_forward_gather.1} parent=12 // pred_fallthru
      _
  $region13: #{mab_forward_gather.1} parent=0 // pred_fallthru
    _
  // Predicated region
  $region14: #{mab_forward_gather.1} parent=0 // pred_check
    %p28 = pneg %p24
  $region15: #{mab_forward_gather.1} parent=0 // pred_check_branch
    %30 = sbr.rel (%p28) target = $region17
  $region16: #{mab_forward_gather.1} parent=0 // pred_region
    %s31 = sshll.u32 1, 1
    %s32 = ssub.s32 %s31, 1
    loop: start=0, step=1, limit=1
    $region18: #{mab_forward_gather.1} parent=16 // loop_pre_header
      _
    $region19: #{mab_forward_gather.1} parent=16 // loop_header
      %s34 = sphi 0, %s38
      %p35 = scmp.ge.s32.totalorder %s34, 1
      %s39 = sphi %s22, %s22
      %s40 = sphi [#allocation2], [#allocation2]
    $region20: #{mab_forward_gather.1} parent=16 // loop_header_branch
      %37 = sbr.rel (%p35) target = $region24
    $region21: #{mab_forward_gather.1} parent=16 // loop_body
      %v41 = vld [vmem:[%s39] sm:%s32]
      %42 = vst [vmem:[%s40] sm:%s32] %v41
    $region22: #{mab_forward_gather.1} parent=16 // loop_footer
      %s38 = sadd.s32 1, %s34
    $region23: #{mab_forward_gather.1} parent=16 // loop_footer_branch
      %33 = sbr.rel target = $region19
    $region24: #{mab_forward_gather.1} parent=16 // loop_exit
      _
  $region17: #{mab_forward_gather.1} parent=0 // pred_fallthru
    _
  // Predicated region
  $region36: #{mab_forward_gather.1} parent=0 // pred_check
    _
  $region37: #{mab_forward_gather.1} parent=0 // pred_check_branch
    %67 = sbr.rel (0) target = $region39
  $region38: #{mab_forward_gather.1} parent=0 // pred_region
    %68 = vsyncadd [#allocation3], 16
  $region39: #{mab_forward_gather.1} parent=0 // pred_fallthru
    _
  %s69 = sadd.s32 %s20, 1
  %s70 = sld [smem:[#allocation5 + %s69]]
  %s71 = scalar_lea.vmem %s1, %s70
  %s72 = scalar_lea.vmem [#allocation2], 1
  %s73 = scalar_lea.sflag [#allocation3], 1
  %p75 = scmp.lt.u32.totalorder 1, 8
  %p76 = pneg %p75
  // Predicated region
  $region40: #{mab_forward_gather.1} parent=0 // pred_check
    _
  $region41: #{mab_forward_gather.1} parent=0 // pred_check_branch
    %78 = sbr.rel (%p75) target = $region43
  $region42: #{mab_forward_gather.1} parent=0 // pred_region
    %s94 = sand.u32 1, 7
    %p95 = scmp.eq.s32.totalorder %s94, 0
    %p96 = pneg %p95
    // Predicated region
    $region55: #{mab_forward_gather.1} parent=42 // pred_check
      _
    $region56: #{mab_forward_gather.1} parent=42 // pred_check_branch
      %98 = sbr.rel (%p95) target = $region58
    $region57: #{mab_forward_gather.1} parent=42 // pred_region
      %s99 = sand.u32 1, 7
      %s100 = ssub.s32 1, %s99
      %s101 = scalar_lea.vmem %s71, %s100
      %s102 = ssub.s32 1, %s99
      %s103 = scalar_lea.vmem %s72, %s102 [#allocation2]
      %s104 = sshll.u32 1, %s99
      %s105 = ssub.s32 %s104, 1
      loop: start=0, step=1, limit=1
      $region59: #{mab_forward_gather.1} parent=57 // loop_pre_header
        _
      $region60: #{mab_forward_gather.1} parent=57 // loop_header
        %s107 = sphi 0, %s111
        %p108 = scmp.ge.s32.totalorder %s107, 1
        %s112 = sphi %s101, %s101
        %s113 = sphi %s103, %s103
      $region61: #{mab_forward_gather.1} parent=57 // loop_header_branch
        %110 = sbr.rel (%p108) target = $region65
      $region62: #{mab_forward_gather.1} parent=57 // loop_body
        %v114 = vld [vmem:[%s112] sm:%s105]
        %115 = vst [vmem:[%s113] sm:%s105] %v114
      $region63: #{mab_forward_gather.1} parent=57 // loop_footer
        %s111 = sadd.s32 1, %s107
      $region64: #{mab_forward_gather.1} parent=57 // loop_footer_branch
        %106 = sbr.rel target = $region60
      $region65: #{mab_forward_gather.1} parent=57 // loop_exit
        _
    $region58: #{mab_forward_gather.1} parent=42 // pred_fallthru
      _
  $region43: #{mab_forward_gather.1} parent=0 // pred_fallthru
    _
  // Predicated region
  $region44: #{mab_forward_gather.1} parent=0 // pred_check
    %p79 = pneg %p75
  $region45: #{mab_forward_gather.1} parent=0 // pred_check_branch
    %81 = sbr.rel (%p79) target = $region47
  $region46: #{mab_forward_gather.1} parent=0 // pred_region
    %s82 = sshll.u32 1, 1
    %s83 = ssub.s32 %s82, 1
    loop: start=0, step=1, limit=1
    $region48: #{mab_forward_gather.1} parent=46 // loop_pre_header
      _
    $region49: #{mab_forward_gather.1} parent=46 // loop_header
      %s85 = sphi 0, %s89
      %p86 = scmp.ge.s32.totalorder %s85, 1
      %s90 = sphi %s71, %s71
      %s91 = sphi %s72, %s72
    $region50: #{mab_forward_gather.1} parent=46 // loop_header_branch
      %88 = sbr.rel (%p86) target = $region54
    $region51: #{mab_forward_gather.1} parent=46 // loop_body
      %v92 = vld [vmem:[%s90] sm:%s83]
      %93 = vst [vmem:[%s91] sm:%s83] %v92
    $region52: #{mab_forward_gather.1} parent=46 // loop_footer
      %s89 = sadd.s32 1, %s85
    $region53: #{mab_forward_gather.1} parent=46 // loop_footer_branch
      %84 = sbr.rel target = $region49
    $region54: #{mab_forward_gather.1} parent=46 // loop_exit
      _
  $region47: #{mab_forward_gather.1} parent=0 // pred_fallthru
    _
  // Predicated region
  $region66: #{mab_forward_gather.1} parent=0 // pred_check
    _
  $region67: #{mab_forward_gather.1} parent=0 // pred_check_branch
    %118 = sbr.rel (0) target = $region69
  $region68: #{mab_forward_gather.1} parent=0 // pred_region
    %119 = vsyncadd %s73, 16
  $region69: #{mab_forward_gather.1} parent=0 // pred_fallthru
    _
  %s120 = sadd.s32 %s20, 2
  %s121 = sld [smem:[#allocation5 + %s120]]
  %s122 = scalar_lea.vmem %s1, %s121
  %s123 = scalar_lea.vmem [#allocation2], 2
  %s124 = scalar_lea.sflag [#allocation3], 2
  %p126 = scmp.lt.u32.totalorder 1, 8
  %p127 = pneg %p126
  // Predicated region
  $region70: #{mab_forward_gather.1} parent=0 // pred_check
    _
  $region71: #{mab_forward_gather.1} parent=0 // pred_check_branch
    %129 = sbr.rel (%p126) target = $region73
  $region72: #{mab_forward_gather.1} parent=0 // pred_region
    %s145 = sand.u32 1, 7
    %p146 = scmp.eq.s32.totalorder %s145, 0
    %p147 = pneg %p146
    // Predicated region
    $region85: #{mab_forward_gather.1} parent=72 // pred_check
      _
    $region86: #{mab_forward_gather.1} parent=72 // pred_check_branch
      %149 = sbr.rel (%p146) target = $region88
    $region87: #{mab_forward_gather.1} parent=72 // pred_region
      %s150 = sand.u32 1, 7
      %s151 = ssub.s32 1, %s150
      %s152 = scalar_lea.vmem %s122, %s151
      %s153 = ssub.s32 1, %s150
      %s154 = scalar_lea.vmem %s123, %s153 [#allocation2]
      %s155 = sshll.u32 1, %s150
      %s156 = ssub.s32 %s155, 1
      loop: start=0, step=1, limit=1
      $region89: #{mab_forward_gather.1} parent=87 // loop_pre_header
        _
      $region90: #{mab_forward_gather.1} parent=87 // loop_header
        %s158 = sphi 0, %s162
        %p159 = scmp.ge.s32.totalorder %s158, 1
        %s163 = sphi %s152, %s152
        %s164 = sphi %s154, %s154
      $region91: #{mab_forward_gather.1} parent=87 // loop_header_branch
        %161 = sbr.rel (%p159) target = $region95
      $region92: #{mab_forward_gather.1} parent=87 // loop_body
        %v165 = vld [vmem:[%s163] sm:%s156]
        %166 = vst [vmem:[%s164] sm:%s156] %v165
      $region93: #{mab_forward_gather.1} parent=87 // loop_footer
        %s162 = sadd.s32 1, %s158
      $region94: #{mab_forward_gather.1} parent=87 // loop_footer_branch
        %157 = sbr.rel target = $region90
      $region95: #{mab_forward_gather.1} parent=87 // loop_exit
        _
    $region88: #{mab_forward_gather.1} parent=72 // pred_fallthru
      _
  $region73: #{mab_forward_gather.1} parent=0 // pred_fallthru
    _
  // Predicated region
  $region74: #{mab_forward_gather.1} parent=0 // pred_check
    %p130 = pneg %p126
  $region75: #{mab_forward_gather.1} parent=0 // pred_check_branch
    %132 = sbr.rel (%p130) target = $region77
  $region76: #{mab_forward_gather.1} parent=0 // pred_region
    %s133 = sshll.u32 1, 1
    %s134 = ssub.s32 %s133, 1
    loop: start=0, step=1, limit=1
    $region78: #{mab_forward_gather.1} parent=76 // loop_pre_header
      _
    $region79: #{mab_forward_gather.1} parent=76 // loop_header
      %s136 = sphi 0, %s140
      %p137 = scmp.ge.s32.totalorder %s136, 1
      %s141 = sphi %s122, %s122
      %s142 = sphi %s123, %s123
    $region80: #{mab_forward_gather.1} parent=76 // loop_header_branch
      %139 = sbr.rel (%p137) target = $region84
    $region81: #{mab_forward_gather.1} parent=76 // loop_body
      %v143 = vld [vmem:[%s141] sm:%s134]
      %144 = vst [vmem:[%s142] sm:%s134] %v143
    $region82: #{mab_forward_gather.1} parent=76 // loop_footer
      %s140 = sadd.s32 1, %s136
    $region83: #{mab_forward_gather.1} parent=76 // loop_footer_branch
      %135 = sbr.rel target = $region79
    $region84: #{mab_forward_gather.1} parent=76 // loop_exit
      _
  $region77: #{mab_forward_gather.1} parent=0 // pred_fallthru
    _
  // Predicated region
  $region96: #{mab_forward_gather.1} parent=0 // pred_check
    _
  $region97: #{mab_forward_gather.1} parent=0 // pred_check_branch
    %169 = sbr.rel (0) target = $region99
  $region98: #{mab_forward_gather.1} parent=0 // pred_region
    %170 = vsyncadd %s124, 16
  $region99: #{mab_forward_gather.1} parent=0 // pred_fallthru
    _
  %s171 = sadd.s32 %s20, 3
  %s172 = sld [smem:[#allocation5 + %s171]]
  %s173 = scalar_lea.vmem %s1, %s172
  %s174 = scalar_lea.vmem [#allocation2], 3
  %s175 = scalar_lea.sflag [#allocation3], 3
  %p177 = scmp.lt.u32.totalorder 1, 8
  %p178 = pneg %p177
  // Predicated region
  $region100: #{mab_forward_gather.1} parent=0 // pred_check
    _
  $region101: #{mab_forward_gather.1} parent=0 // pred_check_branch
    %180 = sbr.rel (%p177) target = $region103
  $region102: #{mab_forward_gather.1} parent=0 // pred_region
    %s196 = sand.u32 1, 7
    %p197 = scmp.eq.s32.totalorder %s196, 0
    %p198 = pneg %p197
    // Predicated region
    $region115: #{mab_forward_gather.1} parent=102 // pred_check
      _
    $region116: #{mab_forward_gather.1} parent=102 // pred_check_branch
      %200 = sbr.rel (%p197) target = $region118
    $region117: #{mab_forward_gather.1} parent=102 // pred_region
      %s201 = sand.u32 1, 7
      %s202 = ssub.s32 1, %s201
      %s203 = scalar_lea.vmem %s173, %s202
      %s204 = ssub.s32 1, %s201
      %s205 = scalar_lea.vmem %s174, %s204 [#allocation2]
      %s206 = sshll.u32 1, %s201
      %s207 = ssub.s32 %s206, 1
      loop: start=0, step=1, limit=1
      $region119: #{mab_forward_gather.1} parent=117 // loop_pre_header
        _
      $region120: #{mab_forward_gather.1} parent=117 // loop_header
        %s209 = sphi 0, %s213
        %p210 = scmp.ge.s32.totalorder %s209, 1
        %s214 = sphi %s203, %s203
        %s215 = sphi %s205, %s205
      $region121: #{mab_forward_gather.1} parent=117 // loop_header_branch
        %212 = sbr.rel (%p210) target = $region125
      $region122: #{mab_forward_gather.1} parent=117 // loop_body
        %v216 = vld [vmem:[%s214] sm:%s207]
        %217 = vst [vmem:[%s215] sm:%s207] %v216
      $region123: #{mab_forward_gather.1} parent=117 // loop_footer
        %s213 = sadd.s32 1, %s209
      $region124: #{mab_forward_gather.1} parent=117 // loop_footer_branch
        %208 = sbr.rel target = $region120
      $region125: #{mab_forward_gather.1} parent=117 // loop_exit
        _
    $region118: #{mab_forward_gather.1} parent=102 // pred_fallthru
      _
  $region103: #{mab_forward_gather.1} parent=0 // pred_fallthru
    _
  // Predicated region
  $region104: #{mab_forward_gather.1} parent=0 // pred_check
    %p181 = pneg %p177
  $region105: #{mab_forward_gather.1} parent=0 // pred_check_branch
    %183 = sbr.rel (%p181) target = $region107
  $region106: #{mab_forward_gather.1} parent=0 // pred_region
    %s184 = sshll.u32 1, 1
    %s185 = ssub.s32 %s184, 1
    loop: start=0, step=1, limit=1
    $region108: #{mab_forward_gather.1} parent=106 // loop_pre_header
      _
    $region109: #{mab_forward_gather.1} parent=106 // loop_header
      %s187 = sphi 0, %s191
      %p188 = scmp.ge.s32.totalorder %s187, 1
      %s192 = sphi %s173, %s173
      %s193 = sphi %s174, %s174
    $region110: #{mab_forward_gather.1} parent=106 // loop_header_branch
      %190 = sbr.rel (%p188) target = $region114
    $region111: #{mab_forward_gather.1} parent=106 // loop_body
      %v194 = vld [vmem:[%s192] sm:%s185]
      %195 = vst [vmem:[%s193] sm:%s185] %v194
    $region112: #{mab_forward_gather.1} parent=106 // loop_footer
      %s191 = sadd.s32 1, %s187
    $region113: #{mab_forward_gather.1} parent=106 // loop_footer_branch
      %186 = sbr.rel target = $region109
    $region114: #{mab_forward_gather.1} parent=106 // loop_exit
      _
  $region107: #{mab_forward_gather.1} parent=0 // pred_fallthru
    _
  // Predicated region
  $region126: #{mab_forward_gather.1} parent=0 // pred_check
    _
  $region127: #{mab_forward_gather.1} parent=0 // pred_check_branch
    %220 = sbr.rel (0) target = $region129
  $region128: #{mab_forward_gather.1} parent=0 // pred_region
    %221 = vsyncadd %s175, 16
  $region129: #{mab_forward_gather.1} parent=0 // pred_fallthru
    _
  %s222 = sadd.s32 %s20, 4
  %s223 = sld [smem:[#allocation5 + %s222]]
  %s224 = scalar_lea.vmem %s1, %s223
  %s225 = scalar_lea.vmem [#allocation2], 4
  %s226 = scalar_lea.sflag [#allocation3], 4
  %p228 = scmp.lt.u32.totalorder 1, 8
  %p229 = pneg %p228
  // Predicated region
  $region130: #{mab_forward_gather.1} parent=0 // pred_check
    _
  $region131: #{mab_forward_gather.1} parent=0 // pred_check_branch
    %231 = sbr.rel (%p228) target = $region133
  $region132: #{mab_forward_gather.1} parent=0 // pred_region
    %s247 = sand.u32 1, 7
    %p248 = scmp.eq.s32.totalorder %s247, 0
    %p249 = pneg %p248
    // Predicated region
    $region145: #{mab_forward_gather.1} parent=132 // pred_check
      _
    $region146: #{mab_forward_gather.1} parent=132 // pred_check_branch
      %251 = sbr.rel (%p248) target = $region148
    $region147: #{mab_forward_gather.1} parent=132 // pred_region
      %s252 = sand.u32 1, 7
      %s253 = ssub.s32 1, %s252
      %s254 = scalar_lea.vmem %s224, %s253
      %s255 = ssub.s32 1, %s252
      %s256 = scalar_lea.vmem %s225, %s255 [#allocation2]
      %s257 = sshll.u32 1, %s252
      %s258 = ssub.s32 %s257, 1
      loop: start=0, step=1, limit=1
      $region149: #{mab_forward_gather.1} parent=147 // loop_pre_header
        _
      $region150: #{mab_forward_gather.1} parent=147 // loop_header
        %s260 = sphi 0, %s264
        %p261 = scmp.ge.s32.totalorder %s260, 1
        %s265 = sphi %s254, %s254
        %s266 = sphi %s256, %s256
      $region151: #{mab_forward_gather.1} parent=147 // loop_header_branch
        %263 = sbr.rel (%p261) target = $region155
      $region152: #{mab_forward_gather.1} parent=147 // loop_body
        %v267 = vld [vmem:[%s265] sm:%s258]
        %268 = vst [vmem:[%s266] sm:%s258] %v267
      $region153: #{mab_forward_gather.1} parent=147 // loop_footer
        %s264 = sadd.s32 1, %s260
      $region154: #{mab_forward_gather.1} parent=147 // loop_footer_branch
        %259 = sbr.rel target = $region150
      $region155: #{mab_forward_gather.1} parent=147 // loop_exit
        _
    $region148: #{mab_forward_gather.1} parent=132 // pred_fallthru
      _
  $region133: #{mab_forward_gather.1} parent=0 // pred_fallthru
    _
  // Predicated region
  $region134: #{mab_forward_gather.1} parent=0 // pred_check
    %p232 = pneg %p228
  $region135: #{mab_forward_gather.1} parent=0 // pred_check_branch
    %234 = sbr.rel (%p232) target = $region137
  $region136: #{mab_forward_gather.1} parent=0 // pred_region
    %s235 = sshll.u32 1, 1
    %s236 = ssub.s32 %s235, 1
    loop: start=0, step=1, limit=1
    $region138: #{mab_forward_gather.1} parent=136 // loop_pre_header
      _
    $region139: #{mab_forward_gather.1} parent=136 // loop_header
      %s238 = sphi 0, %s242
      %p239 = scmp.ge.s32.totalorder %s238, 1
      %s243 = sphi %s224, %s224
      %s244 = sphi %s225, %s225
    $region140: #{mab_forward_gather.1} parent=136 // loop_header_branch
      %241 = sbr.rel (%p239) target = $region144
    $region141: #{mab_forward_gather.1} parent=136 // loop_body
      %v245 = vld [vmem:[%s243] sm:%s236]
      %246 = vst [vmem:[%s244] sm:%s236] %v245
    $region142: #{mab_forward_gather.1} parent=136 // loop_footer
      %s242 = sadd.s32 1, %s238
    $region143: #{mab_forward_gather.1} parent=136 // loop_footer_branch
      %237 = sbr.rel target = $region139
    $region144: #{mab_forward_gather.1} parent=136 // loop_exit
      _
  $region137: #{mab_forward_gather.1} parent=0 // pred_fallthru
    _
  // Predicated region
  $region156: #{mab_forward_gather.1} parent=0 // pred_check
    _
  $region157: #{mab_forward_gather.1} parent=0 // pred_check_branch
    %271 = sbr.rel (0) target = $region159
  $region158: #{mab_forward_gather.1} parent=0 // pred_region
    %272 = vsyncadd %s226, 16
  $region159: #{mab_forward_gather.1} parent=0 // pred_fallthru
    _
  %s273 = sadd.s32 %s20, 5
  %s274 = sld [smem:[#allocation5 + %s273]]
  %s275 = scalar_lea.vmem %s1, %s274
  %s276 = scalar_lea.vmem [#allocation2], 5
  %s277 = scalar_lea.sflag [#allocation3], 5
  %p279 = scmp.lt.u32.totalorder 1, 8
  %p280 = pneg %p279
  // Predicated region
  $region160: #{mab_forward_gather.1} parent=0 // pred_check
    _
  $region161: #{mab_forward_gather.1} parent=0 // pred_check_branch
    %282 = sbr.rel (%p279) target = $region163
  $region162: #{mab_forward_gather.1} parent=0 // pred_region
    %s298 = sand.u32 1, 7
    %p299 = scmp.eq.s32.totalorder %s298, 0
    %p300 = pneg %p299
    // Predicated region
    $region175: #{mab_forward_gather.1} parent=162 // pred_check
      _
    $region176: #{mab_forward_gather.1} parent=162 // pred_check_branch
      %302 = sbr.rel (%p299) target = $region178
    $region177: #{mab_forward_gather.1} parent=162 // pred_region
      %s303 = sand.u32 1, 7
      %s304 = ssub.s32 1, %s303
      %s305 = scalar_lea.vmem %s275, %s304
      %s306 = ssub.s32 1, %s303
      %s307 = scalar_lea.vmem %s276, %s306 [#allocation2]
      %s308 = sshll.u32 1, %s303
      %s309 = ssub.s32 %s308, 1
      loop: start=0, step=1, limit=1
      $region179: #{mab_forward_gather.1} parent=177 // loop_pre_header
        _
      $region180: #{mab_forward_gather.1} parent=177 // loop_header
        %s311 = sphi 0, %s315
        %p312 = scmp.ge.s32.totalorder %s311, 1
        %s316 = sphi %s305, %s305
        %s317 = sphi %s307, %s307
      $region181: #{mab_forward_gather.1} parent=177 // loop_header_branch
        %314 = sbr.rel (%p312) target = $region185
      $region182: #{mab_forward_gather.1} parent=177 // loop_body
        %v318 = vld [vmem:[%s316] sm:%s309]
        %319 = vst [vmem:[%s317] sm:%s309] %v318
      $region183: #{mab_forward_gather.1} parent=177 // loop_footer
        %s315 = sadd.s32 1, %s311
      $region184: #{mab_forward_gather.1} parent=177 // loop_footer_branch
        %310 = sbr.rel target = $region180
      $region185: #{mab_forward_gather.1} parent=177 // loop_exit
        _
    $region178: #{mab_forward_gather.1} parent=162 // pred_fallthru
      _
  $region163: #{mab_forward_gather.1} parent=0 // pred_fallthru
    _
  // Predicated region
  $region164: #{mab_forward_gather.1} parent=0 // pred_check
    %p283 = pneg %p279
  $region165: #{mab_forward_gather.1} parent=0 // pred_check_branch
    %285 = sbr.rel (%p283) target = $region167
  $region166: #{mab_forward_gather.1} parent=0 // pred_region
    %s286 = sshll.u32 1, 1
    %s287 = ssub.s32 %s286, 1
    loop: start=0, step=1, limit=1
    $region168: #{mab_forward_gather.1} parent=166 // loop_pre_header
      _
    $region169: #{mab_forward_gather.1} parent=166 // loop_header
      %s289 = sphi 0, %s293
      %p290 = scmp.ge.s32.totalorder %s289, 1
      %s294 = sphi %s275, %s275
      %s295 = sphi %s276, %s276
    $region170: #{mab_forward_gather.1} parent=166 // loop_header_branch
      %292 = sbr.rel (%p290) target = $region174
    $region171: #{mab_forward_gather.1} parent=166 // loop_body
      %v296 = vld [vmem:[%s294] sm:%s287]
      %297 = vst [vmem:[%s295] sm:%s287] %v296
    $region172: #{mab_forward_gather.1} parent=166 // loop_footer
      %s293 = sadd.s32 1, %s289
    $region173: #{mab_forward_gather.1} parent=166 // loop_footer_branch
      %288 = sbr.rel target = $region169
    $region174: #{mab_forward_gather.1} parent=166 // loop_exit
      _
  $region167: #{mab_forward_gather.1} parent=0 // pred_fallthru
    _
  // Predicated region
  $region186: #{mab_forward_gather.1} parent=0 // pred_check
    _
  $region187: #{mab_forward_gather.1} parent=0 // pred_check_branch
    %322 = sbr.rel (0) target = $region189
  $region188: #{mab_forward_gather.1} parent=0 // pred_region
    %323 = vsyncadd %s277, 16
  $region189: #{mab_forward_gather.1} parent=0 // pred_fallthru
    _
  %s324 = sadd.s32 %s20, 6
  %s325 = sld [smem:[#allocation5 + %s324]]
  %s326 = scalar_lea.vmem %s1, %s325
  %s327 = scalar_lea.vmem [#allocation2], 6
  %s328 = scalar_lea.sflag [#allocation3], 6
  %p330 = scmp.lt.u32.totalorder 1, 8
  %p331 = pneg %p330
  // Predicated region
  $region190: #{mab_forward_gather.1} parent=0 // pred_check
    _
  $region191: #{mab_forward_gather.1} parent=0 // pred_check_branch
    %333 = sbr.rel (%p330) target = $region193
  $region192: #{mab_forward_gather.1} parent=0 // pred_region
    %s349 = sand.u32 1, 7
    %p350 = scmp.eq.s32.totalorder %s349, 0
    %p351 = pneg %p350
    // Predicated region
    $region205: #{mab_forward_gather.1} parent=192 // pred_check
      _
    $region206: #{mab_forward_gather.1} parent=192 // pred_check_branch
      %353 = sbr.rel (%p350) target = $region208
    $region207: #{mab_forward_gather.1} parent=192 // pred_region
      %s354 = sand.u32 1, 7
      %s355 = ssub.s32 1, %s354
      %s356 = scalar_lea.vmem %s326, %s355
      %s357 = ssub.s32 1, %s354
      %s358 = scalar_lea.vmem %s327, %s357 [#allocation2]
      %s359 = sshll.u32 1, %s354
      %s360 = ssub.s32 %s359, 1
      loop: start=0, step=1, limit=1
      $region209: #{mab_forward_gather.1} parent=207 // loop_pre_header
        _
      $region210: #{mab_forward_gather.1} parent=207 // loop_header
        %s362 = sphi 0, %s366
        %p363 = scmp.ge.s32.totalorder %s362, 1
        %s367 = sphi %s356, %s356
        %s368 = sphi %s358, %s358
      $region211: #{mab_forward_gather.1} parent=207 // loop_header_branch
        %365 = sbr.rel (%p363) target = $region215
      $region212: #{mab_forward_gather.1} parent=207 // loop_body
        %v369 = vld [vmem:[%s367] sm:%s360]
        %370 = vst [vmem:[%s368] sm:%s360] %v369
      $region213: #{mab_forward_gather.1} parent=207 // loop_footer
        %s366 = sadd.s32 1, %s362
      $region214: #{mab_forward_gather.1} parent=207 // loop_footer_branch
        %361 = sbr.rel target = $region210
      $region215: #{mab_forward_gather.1} parent=207 // loop_exit
        _
    $region208: #{mab_forward_gather.1} parent=192 // pred_fallthru
      _
  $region193: #{mab_forward_gather.1} parent=0 // pred_fallthru
    _
  // Predicated region
  $region194: #{mab_forward_gather.1} parent=0 // pred_check
    %p334 = pneg %p330
  $region195: #{mab_forward_gather.1} parent=0 // pred_check_branch
    %336 = sbr.rel (%p334) target = $region197
  $region196: #{mab_forward_gather.1} parent=0 // pred_region
    %s337 = sshll.u32 1, 1
    %s338 = ssub.s32 %s337, 1
    loop: start=0, step=1, limit=1
    $region198: #{mab_forward_gather.1} parent=196 // loop_pre_header
      _
    $region199: #{mab_forward_gather.1} parent=196 // loop_header
      %s340 = sphi 0, %s344
      %p341 = scmp.ge.s32.totalorder %s340, 1
      %s345 = sphi %s326, %s326
      %s346 = sphi %s327, %s327
    $region200: #{mab_forward_gather.1} parent=196 // loop_header_branch
      %343 = sbr.rel (%p341) target = $region204
    $region201: #{mab_forward_gather.1} parent=196 // loop_body
      %v347 = vld [vmem:[%s345] sm:%s338]
      %348 = vst [vmem:[%s346] sm:%s338] %v347
    $region202: #{mab_forward_gather.1} parent=196 // loop_footer
      %s344 = sadd.s32 1, %s340
    $region203: #{mab_forward_gather.1} parent=196 // loop_footer_branch
      %339 = sbr.rel target = $region199
    $region204: #{mab_forward_gather.1} parent=196 // loop_exit
      _
  $region197: #{mab_forward_gather.1} parent=0 // pred_fallthru
    _
  // Predicated region
  $region216: #{mab_forward_gather.1} parent=0 // pred_check
    _
  $region217: #{mab_forward_gather.1} parent=0 // pred_check_branch
    %373 = sbr.rel (0) target = $region219
  $region218: #{mab_forward_gather.1} parent=0 // pred_region
    %374 = vsyncadd %s328, 16
  $region219: #{mab_forward_gather.1} parent=0 // pred_fallthru
    _
  %s375 = sadd.s32 %s20, 7
  %s376 = sld [smem:[#allocation5 + %s375]]
  %s377 = scalar_lea.vmem %s1, %s376
  %s378 = scalar_lea.vmem [#allocation2], 7
  %s379 = scalar_lea.sflag [#allocation3], 7
  %p381 = scmp.lt.u32.totalorder 1, 8
  %p382 = pneg %p381
  // Predicated region
  $region220: #{mab_forward_gather.1} parent=0 // pred_check
    _
  $region221: #{mab_forward_gather.1} parent=0 // pred_check_branch
    %384 = sbr.rel (%p381) target = $region223
  $region222: #{mab_forward_gather.1} parent=0 // pred_region
    %s400 = sand.u32 1, 7
    %p401 = scmp.eq.s32.totalorder %s400, 0
    %p402 = pneg %p401
    // Predicated region
    $region235: #{mab_forward_gather.1} parent=222 // pred_check
      _
    $region236: #{mab_forward_gather.1} parent=222 // pred_check_branch
      %404 = sbr.rel (%p401) target = $region238
    $region237: #{mab_forward_gather.1} parent=222 // pred_region
      %s405 = sand.u32 1, 7
      %s406 = ssub.s32 1, %s405
      %s407 = scalar_lea.vmem %s377, %s406
      %s408 = ssub.s32 1, %s405
      %s409 = scalar_lea.vmem %s378, %s408 [#allocation2]
      %s410 = sshll.u32 1, %s405
      %s411 = ssub.s32 %s410, 1
      loop: start=0, step=1, limit=1
      $region239: #{mab_forward_gather.1} parent=237 // loop_pre_header
        _
      $region240: #{mab_forward_gather.1} parent=237 // loop_header
        %s413 = sphi 0, %s417
        %p414 = scmp.ge.s32.totalorder %s413, 1
        %s418 = sphi %s407, %s407
        %s419 = sphi %s409, %s409
      $region241: #{mab_forward_gather.1} parent=237 // loop_header_branch
        %416 = sbr.rel (%p414) target = $region245
      $region242: #{mab_forward_gather.1} parent=237 // loop_body
        %v420 = vld [vmem:[%s418] sm:%s411]
        %421 = vst [vmem:[%s419] sm:%s411] %v420
      $region243: #{mab_forward_gather.1} parent=237 // loop_footer
        %s417 = sadd.s32 1, %s413
      $region244: #{mab_forward_gather.1} parent=237 // loop_footer_branch
        %412 = sbr.rel target = $region240
      $region245: #{mab_forward_gather.1} parent=237 // loop_exit
        _
    $region238: #{mab_forward_gather.1} parent=222 // pred_fallthru
      _
  $region223: #{mab_forward_gather.1} parent=0 // pred_fallthru
    _
  // Predicated region
  $region224: #{mab_forward_gather.1} parent=0 // pred_check
    %p385 = pneg %p381
  $region225: #{mab_forward_gather.1} parent=0 // pred_check_branch
    %387 = sbr.rel (%p385) target = $region227
  $region226: #{mab_forward_gather.1} parent=0 // pred_region
    %s388 = sshll.u32 1, 1
    %s389 = ssub.s32 %s388, 1
    loop: start=0, step=1, limit=1
    $region228: #{mab_forward_gather.1} parent=226 // loop_pre_header
      _
    $region229: #{mab_forward_gather.1} parent=226 // loop_header
      %s391 = sphi 0, %s395
      %p392 = scmp.ge.s32.totalorder %s391, 1
      %s396 = sphi %s377, %s377
      %s397 = sphi %s378, %s378
    $region230: #{mab_forward_gather.1} parent=226 // loop_header_branch
      %394 = sbr.rel (%p392) target = $region234
    $region231: #{mab_forward_gather.1} parent=226 // loop_body
      %v398 = vld [vmem:[%s396] sm:%s389]
      %399 = vst [vmem:[%s397] sm:%s389] %v398
    $region232: #{mab_forward_gather.1} parent=226 // loop_footer
      %s395 = sadd.s32 1, %s391
    $region233: #{mab_forward_gather.1} parent=226 // loop_footer_branch
      %390 = sbr.rel target = $region229
    $region234: #{mab_forward_gather.1} parent=226 // loop_exit
      _
  $region227: #{mab_forward_gather.1} parent=0 // pred_fallthru
    _
  // Predicated region
  $region246: #{mab_forward_gather.1} parent=0 // pred_check
    _
  $region247: #{mab_forward_gather.1} parent=0 // pred_check_branch
    %424 = sbr.rel (0) target = $region249
  $region248: #{mab_forward_gather.1} parent=0 // pred_region
    %425 = vsyncadd %s379, 16
  $region249: #{mab_forward_gather.1} parent=0 // pred_fallthru
    _
  %s426 = sadd.s32 %s20, 8
  %s427 = sld [smem:[#allocation5 + %s426]]
  %s428 = scalar_lea.vmem %s1, %s427
  %s429 = scalar_lea.vmem [#allocation2], 8
  %s430 = scalar_lea.sflag [#allocation3], 8
  %p432 = scmp.lt.u32.totalorder 1, 8
  %p433 = pneg %p432
  // Predicated region
  $region250: #{mab_forward_gather.1} parent=0 // pred_check
    _
  $region251: #{mab_forward_gather.1} parent=0 // pred_check_branch
    %435 = sbr.rel (%p432) target = $region253
  $region252: #{mab_forward_gather.1} parent=0 // pred_region
    %s451 = sand.u32 1, 7
    %p452 = scmp.eq.s32.totalorder %s451, 0
    %p453 = pneg %p452
    // Predicated region
    $region265: #{mab_forward_gather.1} parent=252 // pred_check
      _
    $region266: #{mab_forward_gather.1} parent=252 // pred_check_branch
      %455 = sbr.rel (%p452) target = $region268
    $region267: #{mab_forward_gather.1} parent=252 // pred_region
      %s456 = sand.u32 1, 7
      %s457 = ssub.s32 1, %s456
      %s458 = scalar_lea.vmem %s428, %s457
      %s459 = ssub.s32 1, %s456
      %s460 = scalar_lea.vmem %s429, %s459 [#allocation2]
      %s461 = sshll.u32 1, %s456
      %s462 = ssub.s32 %s461, 1
      loop: start=0, step=1, limit=1
      $region269: #{mab_forward_gather.1} parent=267 // loop_pre_header
        _
      $region270: #{mab_forward_gather.1} parent=267 // loop_header
        %s464 = sphi 0, %s468
        %p465 = scmp.ge.s32.totalorder %s464, 1
        %s469 = sphi %s458, %s458
        %s470 = sphi %s460, %s460
      $region271: #{mab_forward_gather.1} parent=267 // loop_header_branch
        %467 = sbr.rel (%p465) target = $region275
      $region272: #{mab_forward_gather.1} parent=267 // loop_body
        %v471 = vld [vmem:[%s469] sm:%s462]
        %472 = vst [vmem:[%s470] sm:%s462] %v471
      $region273: #{mab_forward_gather.1} parent=267 // loop_footer
        %s468 = sadd.s32 1, %s464
      $region274: #{mab_forward_gather.1} parent=267 // loop_footer_branch
        %463 = sbr.rel target = $region270
      $region275: #{mab_forward_gather.1} parent=267 // loop_exit
        _
    $region268: #{mab_forward_gather.1} parent=252 // pred_fallthru
      _
  $region253: #{mab_forward_gather.1} parent=0 // pred_fallthru
    _
  // Predicated region
  $region254: #{mab_forward_gather.1} parent=0 // pred_check
    %p436 = pneg %p432
  $region255: #{mab_forward_gather.1} parent=0 // pred_check_branch
    %438 = sbr.rel (%p436) target = $region257
  $region256: #{mab_forward_gather.1} parent=0 // pred_region
    %s439 = sshll.u32 1, 1
    %s440 = ssub.s32 %s439, 1
    loop: start=0, step=1, limit=1
    $region258: #{mab_forward_gather.1} parent=256 // loop_pre_header
      _
    $region259: #{mab_forward_gather.1} parent=256 // loop_header
      %s442 = sphi 0, %s446
      %p443 = scmp.ge.s32.totalorder %s442, 1
      %s447 = sphi %s428, %s428
      %s448 = sphi %s429, %s429
    $region260: #{mab_forward_gather.1} parent=256 // loop_header_branch
      %445 = sbr.rel (%p443) target = $region264
    $region261: #{mab_forward_gather.1} parent=256 // loop_body
      %v449 = vld [vmem:[%s447] sm:%s440]
      %450 = vst [vmem:[%s448] sm:%s440] %v449
    $region262: #{mab_forward_gather.1} parent=256 // loop_footer
      %s446 = sadd.s32 1, %s442
    $region263: #{mab_forward_gather.1} parent=256 // loop_footer_branch
      %441 = sbr.rel target = $region259
    $region264: #{mab_forward_gather.1} parent=256 // loop_exit
      _
  $region257: #{mab_forward_gather.1} parent=0 // pred_fallthru
    _
  // Predicated region
  $region276: #{mab_forward_gather.1} parent=0 // pred_check
    _
  $region277: #{mab_forward_gather.1} parent=0 // pred_check_branch
    %475 = sbr.rel (0) target = $region279
  $region278: #{mab_forward_gather.1} parent=0 // pred_region
    %476 = vsyncadd %s430, 16
  $region279: #{mab_forward_gather.1} parent=0 // pred_fallthru
    _
  %s477 = sadd.s32 %s20, 9
  %s478 = sld [smem:[#allocation5 + %s477]]
  %s479 = scalar_lea.vmem %s1, %s478
  %s480 = scalar_lea.vmem [#allocation2], 9
  %s481 = scalar_lea.sflag [#allocation3], 9
  %p483 = scmp.lt.u32.totalorder 1, 8
  %p484 = pneg %p483
  // Predicated region
  $region280: #{mab_forward_gather.1} parent=0 // pred_check
    _
  $region281: #{mab_forward_gather.1} parent=0 // pred_check_branch
    %486 = sbr.rel (%p483) target = $region283
  $region282: #{mab_forward_gather.1} parent=0 // pred_region
    %s502 = sand.u32 1, 7
    %p503 = scmp.eq.s32.totalorder %s502, 0
    %p504 = pneg %p503
    // Predicated region
    $region295: #{mab_forward_gather.1} parent=282 // pred_check
      _
    $region296: #{mab_forward_gather.1} parent=282 // pred_check_branch
      %506 = sbr.rel (%p503) target = $region298
    $region297: #{mab_forward_gather.1} parent=282 // pred_region
      %s507 = sand.u32 1, 7
      %s508 = ssub.s32 1, %s507
      %s509 = scalar_lea.vmem %s479, %s508
      %s510 = ssub.s32 1, %s507
      %s511 = scalar_lea.vmem %s480, %s510 [#allocation2]
      %s512 = sshll.u32 1, %s507
      %s513 = ssub.s32 %s512, 1
      loop: start=0, step=1, limit=1
      $region299: #{mab_forward_gather.1} parent=297 // loop_pre_header
        _
      $region300: #{mab_forward_gather.1} parent=297 // loop_header
        %s515 = sphi 0, %s519
        %p516 = scmp.ge.s32.totalorder %s515, 1
        %s520 = sphi %s509, %s509
        %s521 = sphi %s511, %s511
      $region301: #{mab_forward_gather.1} parent=297 // loop_header_branch
        %518 = sbr.rel (%p516) target = $region305
      $region302: #{mab_forward_gather.1} parent=297 // loop_body
        %v522 = vld [vmem:[%s520] sm:%s513]
        %523 = vst [vmem:[%s521] sm:%s513] %v522
      $region303: #{mab_forward_gather.1} parent=297 // loop_footer
        %s519 = sadd.s32 1, %s515
      $region304: #{mab_forward_gather.1} parent=297 // loop_footer_branch
        %514 = sbr.rel target = $region300
      $region305: #{mab_forward_gather.1} parent=297 // loop_exit
        _
    $region298: #{mab_forward_gather.1} parent=282 // pred_fallthru
      _
  $region283: #{mab_forward_gather.1} parent=0 // pred_fallthru
    _
  // Predicated region
  $region284: #{mab_forward_gather.1} parent=0 // pred_check
    %p487 = pneg %p483
  $region285: #{mab_forward_gather.1} parent=0 // pred_check_branch
    %489 = sbr.rel (%p487) target = $region287
  $region286: #{mab_forward_gather.1} parent=0 // pred_region
    %s490 = sshll.u32 1, 1
    %s491 = ssub.s32 %s490, 1
    loop: start=0, step=1, limit=1
    $region288: #{mab_forward_gather.1} parent=286 // loop_pre_header
      _
    $region289: #{mab_forward_gather.1} parent=286 // loop_header
      %s493 = sphi 0, %s497
      %p494 = scmp.ge.s32.totalorder %s493, 1
      %s498 = sphi %s479, %s479
      %s499 = sphi %s480, %s480
    $region290: #{mab_forward_gather.1} parent=286 // loop_header_branch
      %496 = sbr.rel (%p494) target = $region294
    $region291: #{mab_forward_gather.1} parent=286 // loop_body
      %v500 = vld [vmem:[%s498] sm:%s491]
      %501 = vst [vmem:[%s499] sm:%s491] %v500
    $region292: #{mab_forward_gather.1} parent=286 // loop_footer
      %s497 = sadd.s32 1, %s493
    $region293: #{mab_forward_gather.1} parent=286 // loop_footer_branch
      %492 = sbr.rel target = $region289
    $region294: #{mab_forward_gather.1} parent=286 // loop_exit
      _
  $region287: #{mab_forward_gather.1} parent=0 // pred_fallthru
    _
  // Predicated region
  $region306: #{mab_forward_gather.1} parent=0 // pred_check
    _
  $region307: #{mab_forward_gather.1} parent=0 // pred_check_branch
    %526 = sbr.rel (0) target = $region309
  $region308: #{mab_forward_gather.1} parent=0 // pred_region
    %527 = vsyncadd %s481, 16
  $region309: #{mab_forward_gather.1} parent=0 // pred_fallthru
    _
  %s528 = sadd.s32 %s20, 10
  %s529 = sld [smem:[#allocation5 + %s528]]
  %s530 = scalar_lea.vmem %s1, %s529
  %s531 = scalar_lea.vmem [#allocation2], 10
  %s532 = scalar_lea.sflag [#allocation3], 10
  %p534 = scmp.lt.u32.totalorder 1, 8
  %p535 = pneg %p534
  // Predicated region
  $region310: #{mab_forward_gather.1} parent=0 // pred_check
    _
  $region311: #{mab_forward_gather.1} parent=0 // pred_check_branch
    %537 = sbr.rel (%p534) target = $region313
  $region312: #{mab_forward_gather.1} parent=0 // pred_region
    %s553 = sand.u32 1, 7
    %p554 = scmp.eq.s32.totalorder %s553, 0
    %p555 = pneg %p554
    // Predicated region
    $region325: #{mab_forward_gather.1} parent=312 // pred_check
      _
    $region326: #{mab_forward_gather.1} parent=312 // pred_check_branch
      %557 = sbr.rel (%p554) target = $region328
    $region327: #{mab_forward_gather.1} parent=312 // pred_region
      %s558 = sand.u32 1, 7
      %s559 = ssub.s32 1, %s558
      %s560 = scalar_lea.vmem %s530, %s559
      %s561 = ssub.s32 1, %s558
      %s562 = scalar_lea.vmem %s531, %s561 [#allocation2]
      %s563 = sshll.u32 1, %s558
      %s564 = ssub.s32 %s563, 1
      loop: start=0, step=1, limit=1
      $region329: #{mab_forward_gather.1} parent=327 // loop_pre_header
        _
      $region330: #{mab_forward_gather.1} parent=327 // loop_header
        %s566 = sphi 0, %s570
        %p567 = scmp.ge.s32.totalorder %s566, 1
        %s571 = sphi %s560, %s560
        %s572 = sphi %s562, %s562
      $region331: #{mab_forward_gather.1} parent=327 // loop_header_branch
        %569 = sbr.rel (%p567) target = $region335
      $region332: #{mab_forward_gather.1} parent=327 // loop_body
        %v573 = vld [vmem:[%s571] sm:%s564]
        %574 = vst [vmem:[%s572] sm:%s564] %v573
      $region333: #{mab_forward_gather.1} parent=327 // loop_footer
        %s570 = sadd.s32 1, %s566
      $region334: #{mab_forward_gather.1} parent=327 // loop_footer_branch
        %565 = sbr.rel target = $region330
      $region335: #{mab_forward_gather.1} parent=327 // loop_exit
        _
    $region328: #{mab_forward_gather.1} parent=312 // pred_fallthru
      _
  $region313: #{mab_forward_gather.1} parent=0 // pred_fallthru
    _
  // Predicated region
  $region314: #{mab_forward_gather.1} parent=0 // pred_check
    %p538 = pneg %p534
  $region315: #{mab_forward_gather.1} parent=0 // pred_check_branch
    %540 = sbr.rel (%p538) target = $region317
  $region316: #{mab_forward_gather.1} parent=0 // pred_region
    %s541 = sshll.u32 1, 1
    %s542 = ssub.s32 %s541, 1
    loop: start=0, step=1, limit=1
    $region318: #{mab_forward_gather.1} parent=316 // loop_pre_header
      _
    $region319: #{mab_forward_gather.1} parent=316 // loop_header
      %s544 = sphi 0, %s548
      %p545 = scmp.ge.s32.totalorder %s544, 1
      %s549 = sphi %s530, %s530
      %s550 = sphi %s531, %s531
    $region320: #{mab_forward_gather.1} parent=316 // loop_header_branch
      %547 = sbr.rel (%p545) target = $region324
    $region321: #{mab_forward_gather.1} parent=316 // loop_body
      %v551 = vld [vmem:[%s549] sm:%s542]
      %552 = vst [vmem:[%s550] sm:%s542] %v551
    $region322: #{mab_forward_gather.1} parent=316 // loop_footer
      %s548 = sadd.s32 1, %s544
    $region323: #{mab_forward_gather.1} parent=316 // loop_footer_branch
      %543 = sbr.rel target = $region319
    $region324: #{mab_forward_gather.1} parent=316 // loop_exit
      _
  $region317: #{mab_forward_gather.1} parent=0 // pred_fallthru
    _
  // Predicated region
  $region336: #{mab_forward_gather.1} parent=0 // pred_check
    _
  $region337: #{mab_forward_gather.1} parent=0 // pred_check_branch
    %577 = sbr.rel (0) target = $region339
  $region338: #{mab_forward_gather.1} parent=0 // pred_region
    %578 = vsyncadd %s532, 16
  $region339: #{mab_forward_gather.1} parent=0 // pred_fallthru
    _
  %s579 = sadd.s32 %s20, 11
  %s580 = sld [smem:[#allocation5 + %s579]]
  %s581 = scalar_lea.vmem %s1, %s580
  %s582 = scalar_lea.vmem [#allocation2], 11
  %s583 = scalar_lea.sflag [#allocation3], 11
  %p585 = scmp.lt.u32.totalorder 1, 8
  %p586 = pneg %p585
  // Predicated region
  $region340: #{mab_forward_gather.1} parent=0 // pred_check
    _
  $region341: #{mab_forward_gather.1} parent=0 // pred_check_branch
    %588 = sbr.rel (%p585) target = $region343
  $region342: #{mab_forward_gather.1} parent=0 // pred_region
    %s604 = sand.u32 1, 7
    %p605 = scmp.eq.s32.totalorder %s604, 0
    %p606 = pneg %p605
    // Predicated region
    $region355: #{mab_forward_gather.1} parent=342 // pred_check
      _
    $region356: #{mab_forward_gather.1} parent=342 // pred_check_branch
      %608 = sbr.rel (%p605) target = $region358
    $region357: #{mab_forward_gather.1} parent=342 // pred_region
      %s609 = sand.u32 1, 7
      %s610 = ssub.s32 1, %s609
      %s611 = scalar_lea.vmem %s581, %s610
      %s612 = ssub.s32 1, %s609
      %s613 = scalar_lea.vmem %s582, %s612 [#allocation2]
      %s614 = sshll.u32 1, %s609
      %s615 = ssub.s32 %s614, 1
      loop: start=0, step=1, limit=1
      $region359: #{mab_forward_gather.1} parent=357 // loop_pre_header
        _
      $region360: #{mab_forward_gather.1} parent=357 // loop_header
        %s617 = sphi 0, %s621
        %p618 = scmp.ge.s32.totalorder %s617, 1
        %s622 = sphi %s611, %s611
        %s623 = sphi %s613, %s613
      $region361: #{mab_forward_gather.1} parent=357 // loop_header_branch
        %620 = sbr.rel (%p618) target = $region365
      $region362: #{mab_forward_gather.1} parent=357 // loop_body
        %v624 = vld [vmem:[%s622] sm:%s615]
        %625 = vst [vmem:[%s623] sm:%s615] %v624
      $region363: #{mab_forward_gather.1} parent=357 // loop_footer
        %s621 = sadd.s32 1, %s617
      $region364: #{mab_forward_gather.1} parent=357 // loop_footer_branch
        %616 = sbr.rel target = $region360
      $region365: #{mab_forward_gather.1} parent=357 // loop_exit
        _
    $region358: #{mab_forward_gather.1} parent=342 // pred_fallthru
      _
  $region343: #{mab_forward_gather.1} parent=0 // pred_fallthru
    _
  // Predicated region
  $region344: #{mab_forward_gather.1} parent=0 // pred_check
    %p589 = pneg %p585
  $region345: #{mab_forward_gather.1} parent=0 // pred_check_branch
    %591 = sbr.rel (%p589) target = $region347
  $region346: #{mab_forward_gather.1} parent=0 // pred_region
    %s592 = sshll.u32 1, 1
    %s593 = ssub.s32 %s592, 1
    loop: start=0, step=1, limit=1
    $region348: #{mab_forward_gather.1} parent=346 // loop_pre_header
      _
    $region349: #{mab_forward_gather.1} parent=346 // loop_header
      %s595 = sphi 0, %s599
      %p596 = scmp.ge.s32.totalorder %s595, 1
      %s600 = sphi %s581, %s581
      %s601 = sphi %s582, %s582
    $region350: #{mab_forward_gather.1} parent=346 // loop_header_branch
      %598 = sbr.rel (%p596) target = $region354
    $region351: #{mab_forward_gather.1} parent=346 // loop_body
      %v602 = vld [vmem:[%s600] sm:%s593]
      %603 = vst [vmem:[%s601] sm:%s593] %v602
    $region352: #{mab_forward_gather.1} parent=346 // loop_footer
      %s599 = sadd.s32 1, %s595
    $region353: #{mab_forward_gather.1} parent=346 // loop_footer_branch
      %594 = sbr.rel target = $region349
    $region354: #{mab_forward_gather.1} parent=346 // loop_exit
      _
  $region347: #{mab_forward_gather.1} parent=0 // pred_fallthru
    _
  // Predicated region
  $region366: #{mab_forward_gather.1} parent=0 // pred_check
    _
  $region367: #{mab_forward_gather.1} parent=0 // pred_check_branch
    %628 = sbr.rel (0) target = $region369
  $region368: #{mab_forward_gather.1} parent=0 // pred_region
    %629 = vsyncadd %s583, 16
  $region369: #{mab_forward_gather.1} parent=0 // pred_fallthru
    _
  %s630 = sadd.s32 %s20, 12
  %s631 = sld [smem:[#allocation5 + %s630]]
  %s632 = scalar_lea.vmem %s1, %s631
  %s633 = scalar_lea.vmem [#allocation2], 12
  %s634 = scalar_lea.sflag [#allocation3], 12
  %p636 = scmp.lt.u32.totalorder 1, 8
  %p637 = pneg %p636
  // Predicated region
  $region370: #{mab_forward_gather.1} parent=0 // pred_check
    _
  $region371: #{mab_forward_gather.1} parent=0 // pred_check_branch
    %639 = sbr.rel (%p636) target = $region373
  $region372: #{mab_forward_gather.1} parent=0 // pred_region
    %s655 = sand.u32 1, 7
    %p656 = scmp.eq.s32.totalorder %s655, 0
    %p657 = pneg %p656
    // Predicated region
    $region385: #{mab_forward_gather.1} parent=372 // pred_check
      _
    $region386: #{mab_forward_gather.1} parent=372 // pred_check_branch
      %659 = sbr.rel (%p656) target = $region388
    $region387: #{mab_forward_gather.1} parent=372 // pred_region
      %s660 = sand.u32 1, 7
      %s661 = ssub.s32 1, %s660
      %s662 = scalar_lea.vmem %s632, %s661
      %s663 = ssub.s32 1, %s660
      %s664 = scalar_lea.vmem %s633, %s663 [#allocation2]
      %s665 = sshll.u32 1, %s660
      %s666 = ssub.s32 %s665, 1
      loop: start=0, step=1, limit=1
      $region389: #{mab_forward_gather.1} parent=387 // loop_pre_header
        _
      $region390: #{mab_forward_gather.1} parent=387 // loop_header
        %s668 = sphi 0, %s672
        %p669 = scmp.ge.s32.totalorder %s668, 1
        %s673 = sphi %s662, %s662
        %s674 = sphi %s664, %s664
      $region391: #{mab_forward_gather.1} parent=387 // loop_header_branch
        %671 = sbr.rel (%p669) target = $region395
      $region392: #{mab_forward_gather.1} parent=387 // loop_body
        %v675 = vld [vmem:[%s673] sm:%s666]
        %676 = vst [vmem:[%s674] sm:%s666] %v675
      $region393: #{mab_forward_gather.1} parent=387 // loop_footer
        %s672 = sadd.s32 1, %s668
      $region394: #{mab_forward_gather.1} parent=387 // loop_footer_branch
        %667 = sbr.rel target = $region390
      $region395: #{mab_forward_gather.1} parent=387 // loop_exit
        _
    $region388: #{mab_forward_gather.1} parent=372 // pred_fallthru
      _
  $region373: #{mab_forward_gather.1} parent=0 // pred_fallthru
    _
  // Predicated region
  $region374: #{mab_forward_gather.1} parent=0 // pred_check
    %p640 = pneg %p636
  $region375: #{mab_forward_gather.1} parent=0 // pred_check_branch
    %642 = sbr.rel (%p640) target = $region377
  $region376: #{mab_forward_gather.1} parent=0 // pred_region
    %s643 = sshll.u32 1, 1
    %s644 = ssub.s32 %s643, 1
    loop: start=0, step=1, limit=1
    $region378: #{mab_forward_gather.1} parent=376 // loop_pre_header
      _
    $region379: #{mab_forward_gather.1} parent=376 // loop_header
      %s646 = sphi 0, %s650
      %p647 = scmp.ge.s32.totalorder %s646, 1
      %s651 = sphi %s632, %s632
      %s652 = sphi %s633, %s633
    $region380: #{mab_forward_gather.1} parent=376 // loop_header_branch
      %649 = sbr.rel (%p647) target = $region384
    $region381: #{mab_forward_gather.1} parent=376 // loop_body
      %v653 = vld [vmem:[%s651] sm:%s644]
      %654 = vst [vmem:[%s652] sm:%s644] %v653
    $region382: #{mab_forward_gather.1} parent=376 // loop_footer
      %s650 = sadd.s32 1, %s646
    $region383: #{mab_forward_gather.1} parent=376 // loop_footer_branch
      %645 = sbr.rel target = $region379
    $region384: #{mab_forward_gather.1} parent=376 // loop_exit
      _
  $region377: #{mab_forward_gather.1} parent=0 // pred_fallthru
    _
  // Predicated region
  $region396: #{mab_forward_gather.1} parent=0 // pred_check
    _
  $region397: #{mab_forward_gather.1} parent=0 // pred_check_branch
    %679 = sbr.rel (0) target = $region399
  $region398: #{mab_forward_gather.1} parent=0 // pred_region
    %680 = vsyncadd %s634, 16
  $region399: #{mab_forward_gather.1} parent=0 // pred_fallthru
    _
  %s681 = sadd.s32 %s20, 13
  %s682 = sld [smem:[#allocation5 + %s681]]
  %s683 = scalar_lea.vmem %s1, %s682
  %s684 = scalar_lea.vmem [#allocation2], 13
  %s685 = scalar_lea.sflag [#allocation3], 13
  %p687 = scmp.lt.u32.totalorder 1, 8
  %p688 = pneg %p687
  // Predicated region
  $region400: #{mab_forward_gather.1} parent=0 // pred_check
    _
  $region401: #{mab_forward_gather.1} parent=0 // pred_check_branch
    %690 = sbr.rel (%p687) target = $region403
  $region402: #{mab_forward_gather.1} parent=0 // pred_region
    %s706 = sand.u32 1, 7
    %p707 = scmp.eq.s32.totalorder %s706, 0
    %p708 = pneg %p707
    // Predicated region
    $region415: #{mab_forward_gather.1} parent=402 // pred_check
      _
    $region416: #{mab_forward_gather.1} parent=402 // pred_check_branch
      %710 = sbr.rel (%p707) target = $region418
    $region417: #{mab_forward_gather.1} parent=402 // pred_region
      %s711 = sand.u32 1, 7
      %s712 = ssub.s32 1, %s711
      %s713 = scalar_lea.vmem %s683, %s712
      %s714 = ssub.s32 1, %s711
      %s715 = scalar_lea.vmem %s684, %s714 [#allocation2]
      %s716 = sshll.u32 1, %s711
      %s717 = ssub.s32 %s716, 1
      loop: start=0, step=1, limit=1
      $region419: #{mab_forward_gather.1} parent=417 // loop_pre_header
        _
      $region420: #{mab_forward_gather.1} parent=417 // loop_header
        %s719 = sphi 0, %s723
        %p720 = scmp.ge.s32.totalorder %s719, 1
        %s724 = sphi %s713, %s713
        %s725 = sphi %s715, %s715
      $region421: #{mab_forward_gather.1} parent=417 // loop_header_branch
        %722 = sbr.rel (%p720) target = $region425
      $region422: #{mab_forward_gather.1} parent=417 // loop_body
        %v726 = vld [vmem:[%s724] sm:%s717]
        %727 = vst [vmem:[%s725] sm:%s717] %v726
      $region423: #{mab_forward_gather.1} parent=417 // loop_footer
        %s723 = sadd.s32 1, %s719
      $region424: #{mab_forward_gather.1} parent=417 // loop_footer_branch
        %718 = sbr.rel target = $region420
      $region425: #{mab_forward_gather.1} parent=417 // loop_exit
        _
    $region418: #{mab_forward_gather.1} parent=402 // pred_fallthru
      _
  $region403: #{mab_forward_gather.1} parent=0 // pred_fallthru
    _
  // Predicated region
  $region404: #{mab_forward_gather.1} parent=0 // pred_check
    %p691 = pneg %p687
  $region405: #{mab_forward_gather.1} parent=0 // pred_check_branch
    %693 = sbr.rel (%p691) target = $region407
  $region406: #{mab_forward_gather.1} parent=0 // pred_region
    %s694 = sshll.u32 1, 1
    %s695 = ssub.s32 %s694, 1
    loop: start=0, step=1, limit=1
    $region408: #{mab_forward_gather.1} parent=406 // loop_pre_header
      _
    $region409: #{mab_forward_gather.1} parent=406 // loop_header
      %s697 = sphi 0, %s701
      %p698 = scmp.ge.s32.totalorder %s697, 1
      %s702 = sphi %s683, %s683
      %s703 = sphi %s684, %s684
    $region410: #{mab_forward_gather.1} parent=406 // loop_header_branch
      %700 = sbr.rel (%p698) target = $region414
    $region411: #{mab_forward_gather.1} parent=406 // loop_body
      %v704 = vld [vmem:[%s702] sm:%s695]
      %705 = vst [vmem:[%s703] sm:%s695] %v704
    $region412: #{mab_forward_gather.1} parent=406 // loop_footer
      %s701 = sadd.s32 1, %s697
    $region413: #{mab_forward_gather.1} parent=406 // loop_footer_branch
      %696 = sbr.rel target = $region409
    $region414: #{mab_forward_gather.1} parent=406 // loop_exit
      _
  $region407: #{mab_forward_gather.1} parent=0 // pred_fallthru
    _
  // Predicated region
  $region426: #{mab_forward_gather.1} parent=0 // pred_check
    _
  $region427: #{mab_forward_gather.1} parent=0 // pred_check_branch
    %730 = sbr.rel (0) target = $region429
  $region428: #{mab_forward_gather.1} parent=0 // pred_region
    %731 = vsyncadd %s685, 16
  $region429: #{mab_forward_gather.1} parent=0 // pred_fallthru
    _
  %s732 = sadd.s32 %s20, 14
  %s733 = sld [smem:[#allocation5 + %s732]]
  %s734 = scalar_lea.vmem %s1, %s733
  %s735 = scalar_lea.vmem [#allocation2], 14
  %s736 = scalar_lea.sflag [#allocation3], 14
  %p738 = scmp.lt.u32.totalorder 1, 8
  %p739 = pneg %p738
  // Predicated region
  $region430: #{mab_forward_gather.1} parent=0 // pred_check
    _
  $region431: #{mab_forward_gather.1} parent=0 // pred_check_branch
    %741 = sbr.rel (%p738) target = $region433
  $region432: #{mab_forward_gather.1} parent=0 // pred_region
    %s757 = sand.u32 1, 7
    %p758 = scmp.eq.s32.totalorder %s757, 0
    %p759 = pneg %p758
    // Predicated region
    $region445: #{mab_forward_gather.1} parent=432 // pred_check
      _
    $region446: #{mab_forward_gather.1} parent=432 // pred_check_branch
      %761 = sbr.rel (%p758) target = $region448
    $region447: #{mab_forward_gather.1} parent=432 // pred_region
      %s762 = sand.u32 1, 7
      %s763 = ssub.s32 1, %s762
      %s764 = scalar_lea.vmem %s734, %s763
      %s765 = ssub.s32 1, %s762
      %s766 = scalar_lea.vmem %s735, %s765 [#allocation2]
      %s767 = sshll.u32 1, %s762
      %s768 = ssub.s32 %s767, 1
      loop: start=0, step=1, limit=1
      $region449: #{mab_forward_gather.1} parent=447 // loop_pre_header
        _
      $region450: #{mab_forward_gather.1} parent=447 // loop_header
        %s770 = sphi 0, %s774
        %p771 = scmp.ge.s32.totalorder %s770, 1
        %s775 = sphi %s764, %s764
        %s776 = sphi %s766, %s766
      $region451: #{mab_forward_gather.1} parent=447 // loop_header_branch
        %773 = sbr.rel (%p771) target = $region455
      $region452: #{mab_forward_gather.1} parent=447 // loop_body
        %v777 = vld [vmem:[%s775] sm:%s768]
        %778 = vst [vmem:[%s776] sm:%s768] %v777
      $region453: #{mab_forward_gather.1} parent=447 // loop_footer
        %s774 = sadd.s32 1, %s770
      $region454: #{mab_forward_gather.1} parent=447 // loop_footer_branch
        %769 = sbr.rel target = $region450
      $region455: #{mab_forward_gather.1} parent=447 // loop_exit
        _
    $region448: #{mab_forward_gather.1} parent=432 // pred_fallthru
      _
  $region433: #{mab_forward_gather.1} parent=0 // pred_fallthru
    _
  // Predicated region
  $region434: #{mab_forward_gather.1} parent=0 // pred_check
    %p742 = pneg %p738
  $region435: #{mab_forward_gather.1} parent=0 // pred_check_branch
    %744 = sbr.rel (%p742) target = $region437
  $region436: #{mab_forward_gather.1} parent=0 // pred_region
    %s745 = sshll.u32 1, 1
    %s746 = ssub.s32 %s745, 1
    loop: start=0, step=1, limit=1
    $region438: #{mab_forward_gather.1} parent=436 // loop_pre_header
      _
    $region439: #{mab_forward_gather.1} parent=436 // loop_header
      %s748 = sphi 0, %s752
      %p749 = scmp.ge.s32.totalorder %s748, 1
      %s753 = sphi %s734, %s734
      %s754 = sphi %s735, %s735
    $region440: #{mab_forward_gather.1} parent=436 // loop_header_branch
      %751 = sbr.rel (%p749) target = $region444
    $region441: #{mab_forward_gather.1} parent=436 // loop_body
      %v755 = vld [vmem:[%s753] sm:%s746]
      %756 = vst [vmem:[%s754] sm:%s746] %v755
    $region442: #{mab_forward_gather.1} parent=436 // loop_footer
      %s752 = sadd.s32 1, %s748
    $region443: #{mab_forward_gather.1} parent=436 // loop_footer_branch
      %747 = sbr.rel target = $region439
    $region444: #{mab_forward_gather.1} parent=436 // loop_exit
      _
  $region437: #{mab_forward_gather.1} parent=0 // pred_fallthru
    _
  // Predicated region
  $region456: #{mab_forward_gather.1} parent=0 // pred_check
    _
  $region457: #{mab_forward_gather.1} parent=0 // pred_check_branch
    %781 = sbr.rel (0) target = $region459
  $region458: #{mab_forward_gather.1} parent=0 // pred_region
    %782 = vsyncadd %s736, 16
  $region459: #{mab_forward_gather.1} parent=0 // pred_fallthru
    _
  %s783 = sadd.s32 %s20, 15
  %s784 = sld [smem:[#allocation5 + %s783]]
  %s785 = scalar_lea.vmem %s1, %s784
  %s786 = scalar_lea.vmem [#allocation2], 15
  %s787 = scalar_lea.sflag [#allocation3], 15
  %p789 = scmp.lt.u32.totalorder 1, 8
  %p790 = pneg %p789
  // Predicated region
  $region460: #{mab_forward_gather.1} parent=0 // pred_check
    _
  $region461: #{mab_forward_gather.1} parent=0 // pred_check_branch
    %792 = sbr.rel (%p789) target = $region463
  $region462: #{mab_forward_gather.1} parent=0 // pred_region
    %s808 = sand.u32 1, 7
    %p809 = scmp.eq.s32.totalorder %s808, 0
    %p810 = pneg %p809
    // Predicated region
    $region475: #{mab_forward_gather.1} parent=462 // pred_check
      _
    $region476: #{mab_forward_gather.1} parent=462 // pred_check_branch
      %812 = sbr.rel (%p809) target = $region478
    $region477: #{mab_forward_gather.1} parent=462 // pred_region
      %s813 = sand.u32 1, 7
      %s814 = ssub.s32 1, %s813
      %s815 = scalar_lea.vmem %s785, %s814
      %s816 = ssub.s32 1, %s813
      %s817 = scalar_lea.vmem %s786, %s816 [#allocation2]
      %s818 = sshll.u32 1, %s813
      %s819 = ssub.s32 %s818, 1
      loop: start=0, step=1, limit=1
      $region479: #{mab_forward_gather.1} parent=477 // loop_pre_header
        _
      $region480: #{mab_forward_gather.1} parent=477 // loop_header
        %s821 = sphi 0, %s825
        %p822 = scmp.ge.s32.totalorder %s821, 1
        %s826 = sphi %s815, %s815
        %s827 = sphi %s817, %s817
      $region481: #{mab_forward_gather.1} parent=477 // loop_header_branch
        %824 = sbr.rel (%p822) target = $region485
      $region482: #{mab_forward_gather.1} parent=477 // loop_body
        %v828 = vld [vmem:[%s826] sm:%s819]
        %829 = vst [vmem:[%s827] sm:%s819] %v828
      $region483: #{mab_forward_gather.1} parent=477 // loop_footer
        %s825 = sadd.s32 1, %s821
      $region484: #{mab_forward_gather.1} parent=477 // loop_footer_branch
        %820 = sbr.rel target = $region480
      $region485: #{mab_forward_gather.1} parent=477 // loop_exit
        _
    $region478: #{mab_forward_gather.1} parent=462 // pred_fallthru
      _
  $region463: #{mab_forward_gather.1} parent=0 // pred_fallthru
    _
  // Predicated region
  $region464: #{mab_forward_gather.1} parent=0 // pred_check
    %p793 = pneg %p789
  $region465: #{mab_forward_gather.1} parent=0 // pred_check_branch
    %795 = sbr.rel (%p793) target = $region467
  $region466: #{mab_forward_gather.1} parent=0 // pred_region
    %s796 = sshll.u32 1, 1
    %s797 = ssub.s32 %s796, 1
    loop: start=0, step=1, limit=1
    $region468: #{mab_forward_gather.1} parent=466 // loop_pre_header
      _
    $region469: #{mab_forward_gather.1} parent=466 // loop_header
      %s799 = sphi 0, %s803
      %p800 = scmp.ge.s32.totalorder %s799, 1
      %s804 = sphi %s785, %s785
      %s805 = sphi %s786, %s786
    $region470: #{mab_forward_gather.1} parent=466 // loop_header_branch
      %802 = sbr.rel (%p800) target = $region474
    $region471: #{mab_forward_gather.1} parent=466 // loop_body
      %v806 = vld [vmem:[%s804] sm:%s797]
      %807 = vst [vmem:[%s805] sm:%s797] %v806
    $region472: #{mab_forward_gather.1} parent=466 // loop_footer
      %s803 = sadd.s32 1, %s799
    $region473: #{mab_forward_gather.1} parent=466 // loop_footer_branch
      %798 = sbr.rel target = $region469
    $region474: #{mab_forward_gather.1} parent=466 // loop_exit
      _
  $region467: #{mab_forward_gather.1} parent=0 // pred_fallthru
    _
  // Predicated region
  $region486: #{mab_forward_gather.1} parent=0 // pred_check
    _
  $region487: #{mab_forward_gather.1} parent=0 // pred_check_branch
    %832 = sbr.rel (0) target = $region489
  $region488: #{mab_forward_gather.1} parent=0 // pred_region
    %833 = vsyncadd %s787, 16
  $region489: #{mab_forward_gather.1} parent=0 // pred_fallthru
    _
  %s834 = smul.u32 1, 1
  %s835 = sshll.u32 %s834, 4
  %836 = dma.done [#allocation3], %s835
  %s837 = sshll.u32 %s834, 4
  %838 = dma.done %s73, %s837
  %s839 = sshll.u32 %s834, 4
  %840 = dma.done %s124, %s839
  %s841 = sshll.u32 %s834, 4
  %842 = dma.done %s175, %s841
  %s843 = sshll.u32 %s834, 4
  %844 = dma.done %s226, %s843
  %s845 = sshll.u32 %s834, 4
  %846 = dma.done %s277, %s845
  %s847 = sshll.u32 %s834, 4
  %848 = dma.done %s328, %s847
  %s849 = sshll.u32 %s834, 4
  %850 = dma.done %s379, %s849
  %s851 = sshll.u32 %s834, 4
  %852 = dma.done %s430, %s851
  %s853 = sshll.u32 %s834, 4
  %854 = dma.done %s481, %s853
  %s855 = sshll.u32 %s834, 4
  %856 = dma.done %s532, %s855
  %s857 = sshll.u32 %s834, 4
  %858 = dma.done %s583, %s857
  %s859 = sshll.u32 %s834, 4
  %860 = dma.done %s634, %s859
  %s861 = sshll.u32 %s834, 4
  %862 = dma.done %s685, %s861
  %s863 = sshll.u32 %s834, 4
  %864 = dma.done %s736, %s863
  %s865 = sshll.u32 %s834, 4
  %866 = dma.done %s787, %s865
  %v867 = vld [vmem:[#allocation2] sm:$0xff]
  %v868 = vld [vmem:[#allocation2 + $0x8] sm:$0xff]
  %v869 = vld [vmem:[%s2] sm:$0x1]
  %v871 = vlaneseq
  %v872 = vshrl.u32 %v871, 7
  %v873 = vsub.s32 0, %v872
  %v874 = vrot.slane %v869, %v873
  %v876 = vmul.f32 %v867, %v874
  %v877 = vmul.f32 %v868, %v874
  %vm878 = vcmask 523264
  %v879 = vsel %vm878, %v876, 0.0
  %880 = vadd.xlane.f32.xlu0 %v879
  %v881 = vpop.xlane.xlu0 %880
  %v882 = vsel %vm878, %v877, 0.0
  %883 = vadd.xlane.f32.xlu0 %v882
  %v884 = vpop.xlane.xlu0 %883
  %s885 = sld [smem:[#allocation6]]
  %v886 = vstv %s885
  %v887 = vadd.f32 %v881, %v886
  %v888 = vadd.f32 %v884, %v886
  %vm889 = vcmask 7168
  %890 = vst.msk [vmem:[%s4] sm:$0xff] %vm889, %v887
  %891 = vst.msk [vmem:[%s4 + $0x8] sm:$0xff] %vm889, %v888
  // Predicated region
  $region490: #{mab_forward_gather.1} parent=0 // pred_check
    _
  $region491: #{mab_forward_gather.1} parent=0 // pred_check_branch
    %893 = sbr.rel (0) target = $region493
  $region492: #{mab_forward_gather.1} parent=0 // pred_region
    _
  $region493: #{mab_forward_gather.1} parent=0 // pred_fallthru
    _
  // Predicated region
  $region494: #{mab_forward_gather.1} parent=0 // pred_check
    _
  $region495: #{mab_forward_gather.1} parent=0 // pred_check_branch
    %895 = sbr.rel (0) target = $region497
  $region496: #{mab_forward_gather.1} parent=0 // pred_region
    _
  $region497: #{mab_forward_gather.1} parent=0 // pred_fallthru
    _
  %896 = vsyncmov [#allocation3]
  %s897 = vpop.sfrf %896
  %p898 = scmp.eq.s32.totalorder %s897, 0
  %p899 = pneg %p898
  %901 = shalt.err (%p899)
  %s902 = scalar_lea.sflag [#allocation3], 1
  %903 = vsyncmov %s902
  %s904 = vpop.sfrf %903
  %p905 = scmp.eq.s32.totalorder %s904, 0
  %p906 = pneg %p905
  %908 = shalt.err (%p906)
  %s909 = scalar_lea.sflag [#allocation3], 2
  %910 = vsyncmov %s909
  %s911 = vpop.sfrf %910
  %p912 = scmp.eq.s32.totalorder %s911, 0
  %p913 = pneg %p912
  %915 = shalt.err (%p913)
  %s916 = scalar_lea.sflag [#allocation3], 3
  %917 = vsyncmov %s916
  %s918 = vpop.sfrf %917
  %p919 = scmp.eq.s32.totalorder %s918, 0
  %p920 = pneg %p919
  %922 = shalt.err (%p920)
  %s923 = scalar_lea.sflag [#allocation3], 4
  %924 = vsyncmov %s923
  %s925 = vpop.sfrf %924
  %p926 = scmp.eq.s32.totalorder %s925, 0
  %p927 = pneg %p926
  %929 = shalt.err (%p927)
  %s930 = scalar_lea.sflag [#allocation3], 5
  %931 = vsyncmov %s930
  %s932 = vpop.sfrf %931
  %p933 = scmp.eq.s32.totalorder %s932, 0
  %p934 = pneg %p933
  %936 = shalt.err (%p934)
  %s937 = scalar_lea.sflag [#allocation3], 6
  %938 = vsyncmov %s937
  %s939 = vpop.sfrf %938
  %p940 = scmp.eq.s32.totalorder %s939, 0
  %p941 = pneg %p940
  %943 = shalt.err (%p941)
  %s944 = scalar_lea.sflag [#allocation3], 7
  %945 = vsyncmov %s944
  %s946 = vpop.sfrf %945
  %p947 = scmp.eq.s32.totalorder %s946, 0
  %p948 = pneg %p947
  %950 = shalt.err (%p948)
  %s951 = scalar_lea.sflag [#allocation3], 8
  %952 = vsyncmov %s951
  %s953 = vpop.sfrf %952
  %p954 = scmp.eq.s32.totalorder %s953, 0
  %p955 = pneg %p954
  %957 = shalt.err (%p955)
  %s958 = scalar_lea.sflag [#allocation3], 9
  %959 = vsyncmov %s958
  %s960 = vpop.sfrf %959
  %p961 = scmp.eq.s32.totalorder %s960, 0
  %p962 = pneg %p961
  %964 = shalt.err (%p962)
  %s965 = scalar_lea.sflag [#allocation3], 10
  %966 = vsyncmov %s965
  %s967 = vpop.sfrf %966
  %p968 = scmp.eq.s32.totalorder %s967, 0
  %p969 = pneg %p968
  %971 = shalt.err (%p969)
  %s972 = scalar_lea.sflag [#allocation3], 11
  %973 = vsyncmov %s972
  %s974 = vpop.sfrf %973
  %p975 = scmp.eq.s32.totalorder %s974, 0
  %p976 = pneg %p975
  %978 = shalt.err (%p976)
  %s979 = scalar_lea.sflag [#allocation3], 12
  %980 = vsyncmov %s979
  %s981 = vpop.sfrf %980
  %p982 = scmp.eq.s32.totalorder %s981, 0
  %p983 = pneg %p982
  %985 = shalt.err (%p983)
  %s986 = scalar_lea.sflag [#allocation3], 13
  %987 = vsyncmov %s986
  %s988 = vpop.sfrf %987
  %p989 = scmp.eq.s32.totalorder %s988, 0
  %p990 = pneg %p989
  %992 = shalt.err (%p990)
  %s993 = scalar_lea.sflag [#allocation3], 14
  %994 = vsyncmov %s993
  %s995 = vpop.sfrf %994
  %p996 = scmp.eq.s32.totalorder %s995, 0
  %p997 = pneg %p996
  %999 = shalt.err (%p997)
  %s1000 = scalar_lea.sflag [#allocation3], 15
  %1001 = vsyncmov %s1000
  %s1002 = vpop.sfrf %1001
  %p1003 = scmp.eq.s32.totalorder %s1002, 0
  %p1004 = pneg %p1003
  %1006 = shalt.err (%p1004)

</llo_original>
